<compile_context>
chip_gen: v7x
topology: tpu7x:2x2x1
jax: 0.10.0
libtpu: 0.0.40
codegen_flags: <defaults>
</compile_context>

<pallas_src>
import functools
import re
import numpy as np

import jax
import jax.numpy as jnp
from jax.experimental import pallas as pl
from jax.experimental.pallas import tpu as pltpu


_INV_SQRT2 = float(1.0 / np.sqrt(2.0))


# ----------------------------------------------------------------------------
# Shared math helpers (pure jnp; usable inside and outside the kernel).
# ----------------------------------------------------------------------------
def _softplus_beta(x, beta, threshold=20.0):
    # torch.nn.Softplus(beta): (1/beta)*log1p(exp(beta*x)); linear when
    # beta*x > threshold (torch default threshold = 20).
    bx = x * beta
    safe = jnp.minimum(bx, threshold)
    return jnp.where(bx > threshold, x, jnp.log1p(jnp.exp(safe)) / beta)


def _nested_cvx_rows(value, list_operation, cvx_flag):
    # Transposed analogue of NHRepNet.nested_cvx_output: `value` is
    # [n_branch, chunk_n]; the op_mat matmul is just a row gather and the
    # max/min over the gathered set is order independent, so fold it as
    # pairwise elementwise max/min on [1, chunk_n] slices (pure VPU work,
    # no cross-lane reductions).
    parts = []
    for v in list_operation:
        if isinstance(v, list):
            parts.append(_nested_cvx_rows(value, v, not cvx_flag))
        else:
            parts.append(value[v:v + 1, :])
    op = jnp.maximum if cvx_flag else jnp.minimum
    res = parts[0]
    for p in parts[1:]:
        res = op(res, p)
    return res


def _default_compute_dtype():
    # bf16 matmul inputs pay off on v6e/v7x (bf16-native MXU/VPU/EUP); v5e has
    # no bf16 VPU/EUP, so f32 end-to-end is both faster and exact there.
    try:
        kind = jax.devices()[0].device_kind.lower()
    except Exception:
        return jnp.float32
    m = re.search(r"v(\d+)", kind)
    gen = int(m.group(1)) if m else 0
    return jnp.bfloat16 if gen >= 6 else jnp.float32


# ----------------------------------------------------------------------------
# Pallas kernel: one tile of tile_n points, full MLP + CSG head.
# ----------------------------------------------------------------------------
def _nhrep_kernel(*refs, num_lin, skip_in, csg_tree, flag_convex, beta,
                  compute_dtype, small_k_max, chunk_n):
    x_ref = refs[0]
    param_refs = refs[1:1 + 2 * num_lin]
    out_ref = refs[-1]

    # Weights / biases are tiny and grid-resident; load once per tile.
    w_vals = [param_refs[2 * l][...] for l in range(num_lin)]
    b_vals = [param_refs[2 * l + 1][...].astype(jnp.float32) for l in range(num_lin)]

    tile_n = x_ref.shape[1]
    n_chunks = pl.cdiv(tile_n, chunk_n)

    # Independent lane sub-chunks -> EUP (softplus) of chunk i can co-issue
    # with the MXU matmuls of chunk i+1; also bounds activation vreg pressure.
    for c in range(n_chunks):
        lo = c * chunk_n
        hi = min(tile_n, lo + chunk_n)

        inp = x_ref[:, lo:hi]                          # [d_in, cn]
        h = inp
        for layer in range(num_lin):
            w = w_vals[layer]
            b = b_vals[layer]
            if layer in skip_in:
                h = (jnp.concatenate([h, inp], axis=0) * _INV_SQRT2)
                h = h.astype(compute_dtype)
            k = w.shape[1]
            if k <= small_k_max:
                # Tiny contraction dim (e.g. the d_in=3 input layer): rank-k
                # VPU update instead of an MXU matmul that pads K to 128/256.
                # NOTE: re-benchmark vs MXU per chip (small_k_max is tunable).
                wf = w.astype(jnp.float32)
                hf = h.astype(jnp.float32)
                z = wf[:, 0:1] * hf[0:1, :] + b
                for kk in range(1, k):
                    z = z + wf[:, kk:kk + 1] * hf[kk:kk + 1, :]
            else:
                z = jnp.dot(w, h, preferred_element_type=jnp.float32) + b
            if layer < num_lin - 1:
                # Activation math in f32 (accuracy near the SDF zero set);
                # only the matmul inputs are compute_dtype.
                h = _softplus_beta(z, beta).astype(compute_dtype)
            else:
                h = z                                   # [n_branch, cn], f32

        h_csg = _nested_cvx_rows(h, csg_tree, flag_convex)    # [1, cn]
        # Two direct stores into disjoint rows (no concat / relayout).
        out_ref[0:1, lo:hi] = h_csg.astype(out_ref.dtype)
        out_ref[1:, lo:hi] = h.astype(out_ref.dtype)


# ----------------------------------------------------------------------------
# VMEM budget estimate (rough, (8,128)-tile padded), capped at v7x's 64 MiB.
# ----------------------------------------------------------------------------
def _vmem_limit_bytes(d_in, out_dim, tile_n, flat_params, compute_dtype):
    itm = jnp.dtype(compute_dtype).itemsize

    def padded(r, c, it):
        return pl.cdiv(r, 8) * 8 * pl.cdiv(c, 128) * 128 * it

    est = 2 * padded(d_in, tile_n, itm)                 # x block (dbl-buffered)
    est += 2 * padded(out_dim, tile_n, 4)               # out block
    for p in flat_params:                               # resident params
        r, c = p.shape
        est += 2 * padded(r, c, itm)
    widest = max([p.shape[0] for p in flat_params] + [d_in, out_dim])
    est += 4 * padded(widest, tile_n, 4)                # live activations (f32)
    est += 2 << 20                                      # slack
    return int(min(64 << 20, max(32 << 20, est)))


# ----------------------------------------------------------------------------
# Wrapper: padding, BlockSpecs, grid; restores the module's [N, ...] output.
# ----------------------------------------------------------------------------
def nhrep_forward(x, params, *, csg_tree, skip_in=(), flag_convex=True,
                  beta=100.0, n_branch=2, flag_output=0, tile_n=2048,
                  chunk_n=512, compute_dtype=None, small_k_max=8):
    """x: [N, d_in] float32. params: list of (W [out,in], b [out,1])."""
    n, d_in = x.shape
    num_lin = len(params)
    out_dim = 1 + n_branch
    if compute_dtype is None:
        compute_dtype = _default_compute_dtype()

    # Lane-dense transposed layout: points on the lane axis.
    n128 = pl.cdiv(n, 128) * 128
    tile_n = max(128, (int(tile_n) // 128) * 128)
    # Keep the grid at >=2 steps when possible so both v7x TensorCores get
    # work via the ("parallel",) axis; harmless on single-TC v5e/v6e.
    if n128 >= 256:
        tile_n = min(tile_n, max(128, (n128 // 2) // 128 * 128))
    tile_n = min(tile_n, n128)
    n_pad = pl.cdiv(n, tile_n) * tile_n
    chunk_n = max(128, (int(chunk_n) // 128) * 128)

    # NOTE: wrapper-side HBM transposes are negligible while compute-bound at
    # these widths; for huge N / wide layers, keep the [out_dim, N] layout for
    # downstream consumers instead.
    xt = jnp.asarray(x, compute_dtype).T                # [d_in, N]
    if n_pad != n:
        xt = jnp.pad(xt, ((0, 0), (0, n_pad - n)))

    kernel = functools.partial(
        _nhrep_kernel, num_lin=num_lin, skip_in=tuple(skip_in),
        csg_tree=csg_tree, flag_convex=flag_convex, beta=float(beta),
        compute_dtype=compute_dtype, small_k_max=small_k_max, chunk_n=chunk_n)

    in_specs = [pl.BlockSpec((d_in, tile_n), lambda i: (0, i))]
    flat_params = []
    for w, b in params:
        w = jnp.asarray(w, compute_dtype)
        b = jnp.asarray(b, compute_dtype)
        # Constant index_maps -> params stay resident across grid steps (no
        # re-DMA).  Single-buffering / packing them is negligible at these
        # widths; revisit for 256-512-wide hidden dims under v7x's 64 MiB.
        in_specs.append(pl.BlockSpec(w.shape, lambda i: (0, 0)))
        in_specs.append(pl.BlockSpec(b.shape, lambda i: (0, 0)))
        flat_params += [w, b]

    out_t = pl.pallas_call(
        kernel,
        out_shape=jax.ShapeDtypeStruct((out_dim, n_pad), jnp.float32),
        grid=(n_pad // tile_n,),
        in_specs=in_specs,
        out_specs=pl.BlockSpec((out_dim, tile_n), lambda i: (0, i)),
        compiler_params=pltpu.CompilerParams(
            dimension_semantics=("parallel",),
            vmem_limit_bytes=_vmem_limit_bytes(
                d_in, out_dim, tile_n, flat_params, compute_dtype)),
    )(xt, *flat_params)

    out = out_t[:, :n].T                    # [N, 1 + n_branch]
    if flag_output == 0:
        return out                          # cat([h, branch_values], 1)
    if flag_output == 1:
        return out[:, 0:1]                  # h only
    return out[:, flag_output - 1]          # output_value[:, flag_output - 2]


# ----------------------------------------------------------------------------
# Deterministic parameter init (geometric_init=True path of NHRepNet.__init__)
# Weights stored as [out_features, in_features] (torch layout), bias [out, 1].
# ----------------------------------------------------------------------------
def init_params(key, d_in, dims_sdf, n_branch, skip_in, radius_init=1.0):
    dims = [d_in] + list(dims_sdf) + [n_branch]
    sdf_layers = len(dims)
    params = []
    for layer in range(sdf_layers - 1):
        out_dim = dims[layer + 1] - d_in if (layer + 1) in skip_in else dims[layer + 1]
        in_dim = dims[layer]
        key, sub = jax.random.split(key)
        if layer == sdf_layers - 2:
            # last layer: N(mean=sqrt(pi)/sqrt(in_dim), std=1e-5), bias=-radius
            w = (np.sqrt(np.pi) / np.sqrt(in_dim)
                 + 1e-5 * jax.random.normal(sub, (out_dim, in_dim), jnp.float32))
            b = jnp.full((out_dim, 1), -radius_init, jnp.float32)
        else:
            # hidden layers: N(0, sqrt(2)/sqrt(out_dim)), bias=0
            w = (np.sqrt(2.0) / np.sqrt(out_dim)
                 * jax.random.normal(sub, (out_dim, in_dim), jnp.float32))
            b = jnp.zeros((out_dim, 1), jnp.float32)
        params.append((w, b))
    return params


# ----------------------------------------------------------------------------
# Pure-JAX reference (row-major, flag_output == 0) for correctness checks.
# ----------------------------------------------------------------------------
def _nested_cvx_cols(value, list_operation, cvx_flag):
    parts = []
    for v in list_operation:
        if isinstance(v, list):
            parts.append(_nested_cvx_cols(value, v, not cvx_flag))
        else:
            parts.append(value[:, v:v + 1])
    mat = jnp.concatenate(parts, axis=1)
    red = jnp.max if cvx_flag else jnp.min
    return red(mat, axis=1, keepdims=True)


def nhrep_reference(x, params, *, csg_tree, skip_in, flag_convex, beta):
    h = x
    num_lin = len(params)
    for layer, (w, b) in enumerate(params):
        if layer in skip_in:
            h = jnp.concatenate([h, x], axis=-1) * _INV_SQRT2
        h = jnp.dot(h, w.T, precision=jax.lax.Precision.HIGHEST) + b[:, 0]
        if layer < num_lin - 1:
            h = _softplus_beta(h, float(beta))
    out_val = h
    h_csg = _nested_cvx_cols(out_val, csg_tree, flag_convex)
    return jnp.concatenate([h_csg, out_val], axis=1)


# TODO(synk): Sine activation (geometric_init=False) and the soft-blend CSG
# variants (min/max_soft_blend, nested_cvx_output_soft_blend) are not used by
# the module's default forward and are not ported.

if __name__ == "__main__":
    key = jax.random.PRNGKey(0)
    beta = 100.0

    # --- Config A: d_in=3, hidden [32, 32], 3 branches, nested CSG tree
    #     max(b0, min(b1, b2)), no skip connections.  N deliberately not a
    #     multiple of 128 so the pad/slice tail path is exercised.
    d_in, dims_sdf, n_branch = 3, [32, 32], 3
    csg_tree, skip_in, flag_convex = [0, [1, 2]], (), True
    N = 1000

    key, xk, pk = jax.random.split(key, 3)
    x = jax.random.normal(xk, (N, d_in), jnp.float32)
    params = init_params(pk, d_in, dims_sdf, n_branch, skip_in)
    ref = nhrep_reference(x, params, csg_tree=csg_tree, skip_in=skip_in,
                          flag_convex=flag_convex, beta=beta)

    # Exact f32 path (chip-independent strict check).
    out_f32 = jax.block_until_ready(nhrep_forward(
        x, params, csg_tree=csg_tree, skip_in=skip_in, flag_convex=flag_convex,
        beta=beta, n_branch=n_branch, compute_dtype=jnp.float32))
    assert out_f32.shape == (N, 1 + n_branch)
    np.testing.assert_allclose(np.asarray(out_f32), np.asarray(ref),
                               rtol=1e-4, atol=1e-4)

    # Chip-default path (bf16 matmul inputs + f32 softplus on v6e/v7x,
    # f32 end-to-end on v5e): loose-tolerance accuracy check.
    out_def = jax.block_until_ready(nhrep_forward(
        x, params, csg_tree=csg_tree, skip_in=skip_in, flag_convex=flag_convex,
        beta=beta, n_branch=n_branch))
    assert out_def.shape == (N, 1 + n_branch)
    np.testing.assert_allclose(np.asarray(out_def), np.asarray(ref),
                               rtol=1e-1, atol=1e-1)

    # --- Config B: skip connection into layer 2 (skip_in=(2,)), 2 branches.
    d_in_b, dims_b, n_branch_b = 3, [32, 32, 32], 2
    csg_b, skip_b = [0, 1], (2,)
    N_b = 777
    key, xk_b, pk_b = jax.random.split(key, 3)
    x_b = jax.random.normal(xk_b, (N_b, d_in_b), jnp.float32)
    params_b = init_params(pk_b, d_in_b, dims_b, n_branch_b, skip_b)
    out_b = jax.block_until_ready(nhrep_forward(
        x_b, params_b, csg_tree=csg_b, skip_in=skip_b, flag_convex=True,
        beta=beta, n_branch=n_branch_b, compute_dtype=jnp.float32))
    ref_b = nhrep_reference(x_b, params_b, csg_tree=csg_b, skip_in=skip_b,
                            flag_convex=True, beta=beta)
    assert out_b.shape == (N_b, 1 + n_branch_b)
    np.testing.assert_allclose(np.asarray(out_b), np.asarray(ref_b),
                               rtol=1e-4, atol=1e-4)

    print("KERNEL_OK")
</pallas_src>

<mosaic_0001>
module attributes {stable_mosaic.version = 11 : i64} {
  func.func @_nhrep_kernel(%arg0: i32, %arg1: memref<3x512xf32, #tpu.memory_space<vmem>>, %arg2: memref<32x3xf32, #tpu.memory_space<vmem>>, %arg3: memref<32x1xf32, #tpu.memory_space<vmem>>, %arg4: memref<32x32xf32, #tpu.memory_space<vmem>>, %arg5: memref<32x1xf32, #tpu.memory_space<vmem>>, %arg6: memref<3x32xf32, #tpu.memory_space<vmem>>, %arg7: memref<3x1xf32, #tpu.memory_space<vmem>>, %arg8: memref<4x512xf32, #tpu.memory_space<vmem>>) attributes {dimension_semantics = [#tpu.dimension_semantics<parallel>], iteration_bounds = array<i64: 2>, scalar_prefetch = 0 : i64, scratch_operands = 0 : i64, tpu.core_type = #tpu.core_type<tc>, window_params = [{transform_indices = @transform_0, window_bounds = array<i64: 3, 512>}, {pipeline_mode = #tpu.pipeline_mode<synchronous>, transform_indices = @transform_1, window_bounds = array<i64: 32, 3>}, {pipeline_mode = #tpu.pipeline_mode<synchronous>, transform_indices = @transform_2, window_bounds = array<i64: 32, 1>}, {pipeline_mode = #tpu.pipeline_mode<synchronous>, transform_indices = @transform_3, window_bounds = array<i64: 32, 32>}, {pipeline_mode = #tpu.pipeline_mode<synchronous>, transform_indices = @transform_4, window_bounds = array<i64: 32, 1>}, {pipeline_mode = #tpu.pipeline_mode<synchronous>, transform_indices = @transform_5, window_bounds = array<i64: 3, 32>}, {pipeline_mode = #tpu.pipeline_mode<synchronous>, transform_indices = @transform_6, window_bounds = array<i64: 3, 1>}, {transform_indices = @transform_7, window_bounds = array<i64: 4, 512>}]} {
    %c0 = arith.constant 0 : index
    %c0_0 = arith.constant 0 : index
    %0 = vector.load %arg2[%c0, %c0_0] : memref<32x3xf32, #tpu.memory_space<vmem>>, vector<32x3xf32>
    %c0_1 = arith.constant 0 : index
    %c0_2 = arith.constant 0 : index
    %1 = vector.load %arg4[%c0_1, %c0_2] : memref<32x32xf32, #tpu.memory_space<vmem>>, vector<32x32xf32>
    %c0_3 = arith.constant 0 : index
    %c0_4 = arith.constant 0 : index
    %2 = vector.load %arg6[%c0_3, %c0_4] : memref<3x32xf32, #tpu.memory_space<vmem>>, vector<3x32xf32>
    %c0_5 = arith.constant 0 : index
    %c0_6 = arith.constant 0 : index
    %3 = vector.load %arg3[%c0_5, %c0_6] : memref<32x1xf32, #tpu.memory_space<vmem>>, vector<32x1xf32>
    %c0_7 = arith.constant 0 : index
    %c0_8 = arith.constant 0 : index
    %4 = vector.load %arg5[%c0_7, %c0_8] : memref<32x1xf32, #tpu.memory_space<vmem>>, vector<32x1xf32>
    %c0_9 = arith.constant 0 : index
    %c0_10 = arith.constant 0 : index
    %5 = vector.load %arg7[%c0_9, %c0_10] : memref<3x1xf32, #tpu.memory_space<vmem>>, vector<3x1xf32>
    %c0_11 = arith.constant 0 : index
    %c0_12 = arith.constant 0 : index
    %6 = vector.load %arg1[%c0_11, %c0_12] : memref<3x512xf32, #tpu.memory_space<vmem>>, vector<3x512xf32>
    %7 = vector.extract_strided_slice %0 {offsets = [0, 0], sizes = [32, 1], strides = [1, 1]} : vector<32x3xf32> to vector<32x1xf32>
    %8 = vector.extract_strided_slice %6 {offsets = [0, 0], sizes = [1, 512], strides = [1, 1]} : vector<3x512xf32> to vector<1x512xf32>
    %9 = vector.broadcast %7 : vector<32x1xf32> to vector<32x512xf32>
    %10 = vector.broadcast %8 : vector<1x512xf32> to vector<32x512xf32>
    %11 = arith.mulf %9, %10 : vector<32x512xf32>
    %12 = vector.broadcast %3 : vector<32x1xf32> to vector<32x512xf32>
    %13 = arith.addf %11, %12 : vector<32x512xf32>
    %14 = vector.extract_strided_slice %0 {offsets = [0, 1], sizes = [32, 1], strides = [1, 1]} : vector<32x3xf32> to vector<32x1xf32>
    %15 = vector.extract_strided_slice %6 {offsets = [1, 0], sizes = [1, 512], strides = [1, 1]} : vector<3x512xf32> to vector<1x512xf32>
    %16 = vector.broadcast %14 : vector<32x1xf32> to vector<32x512xf32>
    %17 = vector.broadcast %15 : vector<1x512xf32> to vector<32x512xf32>
    %18 = arith.mulf %16, %17 : vector<32x512xf32>
    %19 = arith.addf %13, %18 : vector<32x512xf32>
    %20 = vector.extract_strided_slice %0 {offsets = [0, 2], sizes = [32, 1], strides = [1, 1]} : vector<32x3xf32> to vector<32x1xf32>
    %21 = vector.extract_strided_slice %6 {offsets = [2, 0], sizes = [1, 512], strides = [1, 1]} : vector<3x512xf32> to vector<1x512xf32>
    %22 = vector.broadcast %20 : vector<32x1xf32> to vector<32x512xf32>
    %23 = vector.broadcast %21 : vector<1x512xf32> to vector<32x512xf32>
    %24 = arith.mulf %22, %23 : vector<32x512xf32>
    %25 = arith.addf %19, %24 : vector<32x512xf32>
    %cst = arith.constant 1.000000e+02 : f32
    %26 = vector.broadcast %cst : f32 to vector<32x512xf32>
    %27 = arith.mulf %25, %26 : vector<32x512xf32>
    %cst_13 = arith.constant 2.000000e+01 : f32
    %28 = vector.broadcast %cst_13 : f32 to vector<32x512xf32>
    %29 = arith.minimumf %27, %28 : vector<32x512xf32>
    %cst_14 = arith.constant 2.000000e+01 : f32
    %30 = vector.broadcast %cst_14 : f32 to vector<32x512xf32>
    %31 = arith.cmpf ogt, %27, %30 : vector<32x512xf32>
    %32 = math.exp %29 : vector<32x512xf32>
    %33 = math.log1p %32 : vector<32x512xf32>
    %cst_15 = arith.constant 1.000000e+02 : f32
    %34 = vector.broadcast %cst_15 : f32 to vector<32x512xf32>
    %35 = arith.divf %33, %34 : vector<32x512xf32>
    %36 = arith.select %31, %25, %35 : vector<32x512xi1>, vector<32x512xf32>
    %cst_16 = arith.constant dense<0.000000e+00> : vector<32x512xf32>
    %37 = tpu.matmul %1, %36, %cst_16 {dimension_numbers = #tpu.dot_dimension_numbers<[1], [0], [0], [1], [0, 0, 1, 1], [], []>} : vector<32x32xf32>, vector<32x512xf32>, vector<32x512xf32> -> vector<32x512xf32>
    %38 = vector.broadcast %4 : vector<32x1xf32> to vector<32x512xf32>
    %39 = arith.addf %37, %38 : vector<32x512xf32>
    %cst_17 = arith.constant 1.000000e+02 : f32
    %40 = vector.broadcast %cst_17 : f32 to vector<32x512xf32>
    %41 = arith.mulf %39, %40 : vector<32x512xf32>
    %cst_18 = arith.constant 2.000000e+01 : f32
    %42 = vector.broadcast %cst_18 : f32 to vector<32x512xf32>
    %43 = arith.minimumf %41, %42 : vector<32x512xf32>
    %cst_19 = arith.constant 2.000000e+01 : f32
    %44 = vector.broadcast %cst_19 : f32 to vector<32x512xf32>
    %45 = arith.cmpf ogt, %41, %44 : vector<32x512xf32>
    %46 = math.exp %43 : vector<32x512xf32>
    %47 = math.log1p %46 : vector<32x512xf32>
    %cst_20 = arith.constant 1.000000e+02 : f32
    %48 = vector.broadcast %cst_20 : f32 to vector<32x512xf32>
    %49 = arith.divf %47, %48 : vector<32x512xf32>
    %50 = arith.select %45, %39, %49 : vector<32x512xi1>, vector<32x512xf32>
    %cst_21 = arith.constant dense<0.000000e+00> : vector<3x512xf32>
    %51 = tpu.matmul %2, %50, %cst_21 {dimension_numbers = #tpu.dot_dimension_numbers<[1], [0], [0], [1], [0, 0, 1, 1], [], []>} : vector<3x32xf32>, vector<32x512xf32>, vector<3x512xf32> -> vector<3x512xf32>
    %52 = vector.broadcast %5 : vector<3x1xf32> to vector<3x512xf32>
    %53 = arith.addf %51, %52 : vector<3x512xf32>
    %54 = vector.extract_strided_slice %53 {offsets = [0, 0], sizes = [1, 512], strides = [1, 1]} : vector<3x512xf32> to vector<1x512xf32>
    %55 = vector.extract_strided_slice %53 {offsets = [1, 0], sizes = [1, 512], strides = [1, 1]} : vector<3x512xf32> to vector<1x512xf32>
    %56 = vector.extract_strided_slice %53 {offsets = [2, 0], sizes = [1, 512], strides = [1, 1]} : vector<3x512xf32> to vector<1x512xf32>
    %57 = arith.minimumf %55, %56 : vector<1x512xf32>
    %58 = arith.maximumf %54, %57 : vector<1x512xf32>
    %c0_22 = arith.constant 0 : index
    %c0_23 = arith.constant 0 : index
    %59 = vector.load %arg8[%c0_22, %c0_23] : memref<4x512xf32, #tpu.memory_space<vmem>>, vector<1x512xf32>
    tpu.vector_store %arg8[%c0_22, %c0_23], %58 {strides = array<i32>} : memref<4x512xf32, #tpu.memory_space<vmem>>, vector<1x512xf32>,
    %c1 = arith.constant 1 : index
    %c0_24 = arith.constant 0 : index
    %60 = vector.load %arg8[%c1, %c0_24] : memref<4x512xf32, #tpu.memory_space<vmem>>, vector<3x512xf32>
    tpu.vector_store %arg8[%c1, %c0_24], %53 {strides = array<i32>} : memref<4x512xf32, #tpu.memory_space<vmem>>, vector<3x512xf32>,
    return
  }
  func.func @transform_0(%arg0: i32) -> (i32, i32) {
    %c0_i32 = arith.constant 0 : i32
    %c0_i32_0 = arith.constant 0 : i32
    return %c0_i32, %arg0 : i32, i32
  }
  func.func @transform_1(%arg0: i32) -> (i32, i32) {
    %c0_i32 = arith.constant 0 : i32
    %c0_i32_0 = arith.constant 0 : i32
    %c0_i32_1 = arith.constant 0 : i32
    return %c0_i32, %c0_i32_0 : i32, i32
  }
  func.func @transform_2(%arg0: i32) -> (i32, i32) {
    %c0_i32 = arith.constant 0 : i32
    %c0_i32_0 = arith.constant 0 : i32
    %c0_i32_1 = arith.constant 0 : i32
    return %c0_i32, %c0_i32_0 : i32, i32
  }
  func.func @transform_3(%arg0: i32) -> (i32, i32) {
    %c0_i32 = arith.constant 0 : i32
    %c0_i32_0 = arith.constant 0 : i32
    %c0_i32_1 = arith.constant 0 : i32
    return %c0_i32, %c0_i32_0 : i32, i32
  }
  func.func @transform_4(%arg0: i32) -> (i32, i32) {
    %c0_i32 = arith.constant 0 : i32
    %c0_i32_0 = arith.constant 0 : i32
    %c0_i32_1 = arith.constant 0 : i32
    return %c0_i32, %c0_i32_0 : i32, i32
  }
  func.func @transform_5(%arg0: i32) -> (i32, i32) {
    %c0_i32 = arith.constant 0 : i32
    %c0_i32_0 = arith.constant 0 : i32
    %c0_i32_1 = arith.constant 0 : i32
    return %c0_i32, %c0_i32_0 : i32, i32
  }
  func.func @transform_6(%arg0: i32) -> (i32, i32) {
    %c0_i32 = arith.constant 0 : i32
    %c0_i32_0 = arith.constant 0 : i32
    %c0_i32_1 = arith.constant 0 : i32
    return %c0_i32, %c0_i32_0 : i32, i32
  }
  func.func @transform_7(%arg0: i32) -> (i32, i32) {
    %c0_i32 = arith.constant 0 : i32
    %c0_i32_0 = arith.constant 0 : i32
    return %c0_i32, %arg0 : i32, i32
  }
}

</mosaic_0001>

<llo_original>
// kernel: tpu_custom_call.1
$region0: #{tpu_custom_call.1}
  #allocation0 [shape = 'u32[]', space=smem, size = 0x4, offset = 0x4, fixed_abs, tag = 'smem constant byte address 0x4 - core index']
  #allocation1 [shape = 'u32[144,128]{1,0:T(1,128)}', space=vmem, size = 0x12000, scoped, tag = 'internal scratch']
  %s0 = inlined_call_operand.vmem [shape: f32[3,1024], index: 0, kind: input, shape index: {}]
  %s1 = inlined_call_operand.vmem [shape: f32[32,3], index: 1, kind: input, shape index: {}]
  %s2 = inlined_call_operand.vmem [shape: f32[32,1], index: 2, kind: input, shape index: {}]
  %s3 = inlined_call_operand.vmem [shape: f32[32,32], index: 3, kind: input, shape index: {}]
  %s4 = inlined_call_operand.vmem [shape: f32[32,1], index: 4, kind: input, shape index: {}]
  %s5 = inlined_call_operand.vmem [shape: f32[3,32], index: 5, kind: input, shape index: {}]
  %s6 = inlined_call_operand.vmem [shape: f32[3,1], index: 6, kind: input, shape index: {}]
  %s7 = inlined_call_operand.hbm [shape: f32[4,1024], index: 7, kind: output, shape index: {}]
  %s8 = sld [smem:[#allocation0]]
  $region61: #{tpu_custom_call.1} parent=0
    _
  %s10 = ssub.s32 1, %s8
  %s11 = scalar_select 0, %s10, %s8
  $region1: #{tpu_custom_call.1} parent=0
    #allocation2 [shape = 'u8[16384]{0}', space=vmem, size = 0x4000, scoped, tag = 'output window, operand 0']
    #allocation3 [shape = 's32[2]{0}', space=sflag, size = 0x8, scoped, tag = 'scoped memory for tpu_custom_call.1']
    %12 = vsyncpa [#allocation3], 0
    %s13 = scalar_lea.sflag [#allocation3], 1
    %14 = vsyncpa %s13, 0
    loop: start=0, step=1, limit=4
    $region2: #{tpu_custom_call.1} parent=1 // loop_pre_header
      _
    $region3: #{tpu_custom_call.1} parent=1 // loop_header
      %s16 = sphi 0, %s20
      %p17 = scmp.ge.s32.totalorder %s16, 4
      %s26 = sphi 0, %s28
      %s29 = sphi 0, %s26
      %s30 = sphi 0, %s29
      %s46 = sphi 0, %s30
      %s50 = sphi 0, %s50
      %s52 = sphi 0, %s50
      %s53 = sphi 0, %s52
      %s67 = sphi 0, %s53
      %s71 = sphi 0, %s71
      %s73 = sphi 0, %s71
      %s74 = sphi 0, %s73
      %s88 = sphi 0, %s74
      %s92 = sphi 0, %s92
      %s94 = sphi 0, %s92
      %s95 = sphi 0, %s94
      %s109 = sphi 0, %s95
      %s113 = sphi 0, %s113
      %s115 = sphi 0, %s113
      %s116 = sphi 0, %s115
      %s130 = sphi 0, %s116
      %s134 = sphi 0, %s134
      %s136 = sphi 0, %s134
      %s137 = sphi 0, %s136
      %s151 = sphi 0, %s137
      %s155 = sphi 0, %s155
      %s157 = sphi 0, %s155
      %s158 = sphi 0, %s157
      %s172 = sphi 0, %s158
      %s178 = sphi 0, %s180
      %s181 = sphi 0, %s178
      %s182 = sphi 0, %s181
      %s198 = sphi 0, %s182
    $region4: #{tpu_custom_call.1} parent=1 // loop_header_branch
      %19 = sbr.rel (%p17) target = $region8
    $region5: #{tpu_custom_call.1} parent=1 // loop_body
      %s21 = ssub.s32 %s16, 1
      %s22 = ssub.s32 %s16, 2
      %s23 = sadd.s32 %s16, 1
      %s24 = ssub.s32 %s16, %s23
      %p25 = scmp.eq.s32.totalorder %s24, 0
      %s27 = sadd.s32 %s26, 1
      %s28 = scalar_select %p25, %s26, %s27
      %p31 = pneg %p25
      %p32 = scmp.eq.s32.totalorder %s16, 1
      %p33 = por %p31, %p32
      %p34 = scmp.ne.s32.totalorder %s26, %s29
      %p35 = scmp.eq.s32.totalorder %s16, 0
      %p36 = por %p34, %p35
      %p37 = scmp.ne.s32.totalorder %s26, %s29
      %p38 = scmp.eq.s32.totalorder %s21, 1
      %p39 = por %p37, %p38
      %p40 = scmp.ne.s32.totalorder %s29, %s30
      %p41 = scmp.eq.s32.totalorder %s21, 0
      %p42 = por %p40, %p41
      %p43 = scmp.ne.s32.totalorder %s29, %s30
      %p44 = scmp.eq.s32.totalorder %s22, 1
      %p45 = por %p43, %p44
      %p47 = scmp.ne.s32.totalorder %s30, %s46
      %p48 = scmp.eq.s32.totalorder %s22, 0
      %p49 = por %p47, %p48
      %s51 = sadd.s32 %s50, 1
      %p54 = scmp.eq.s32.totalorder %s16, 1
      %p55 = scmp.ne.s32.totalorder %s50, %s52
      %p56 = scmp.eq.s32.totalorder %s16, 0
      %p57 = por %p55, %p56
      %p58 = scmp.ne.s32.totalorder %s50, %s52
      %p59 = scmp.eq.s32.totalorder %s21, 1
      %p60 = por %p58, %p59
      %p61 = scmp.ne.s32.totalorder %s52, %s53
      %p62 = scmp.eq.s32.totalorder %s21, 0
      %p63 = por %p61, %p62
      %p64 = scmp.ne.s32.totalorder %s52, %s53
      %p65 = scmp.eq.s32.totalorder %s22, 1
      %p66 = por %p64, %p65
      %p68 = scmp.ne.s32.totalorder %s53, %s67
      %p69 = scmp.eq.s32.totalorder %s22, 0
      %p70 = por %p68, %p69
      %s72 = sadd.s32 %s71, 1
      %p75 = scmp.eq.s32.totalorder %s16, 1
      %p76 = scmp.ne.s32.totalorder %s71, %s73
      %p77 = scmp.eq.s32.totalorder %s16, 0
      %p78 = por %p76, %p77
      %p79 = scmp.ne.s32.totalorder %s71, %s73
      %p80 = scmp.eq.s32.totalorder %s21, 1
      %p81 = por %p79, %p80
      %p82 = scmp.ne.s32.totalorder %s73, %s74
      %p83 = scmp.eq.s32.totalorder %s21, 0
      %p84 = por %p82, %p83
      %p85 = scmp.ne.s32.totalorder %s73, %s74
      %p86 = scmp.eq.s32.totalorder %s22, 1
      %p87 = por %p85, %p86
      %p89 = scmp.ne.s32.totalorder %s74, %s88
      %p90 = scmp.eq.s32.totalorder %s22, 0
      %p91 = por %p89, %p90
      %s93 = sadd.s32 %s92, 1
      %p96 = scmp.eq.s32.totalorder %s16, 1
      %p97 = scmp.ne.s32.totalorder %s92, %s94
      %p98 = scmp.eq.s32.totalorder %s16, 0
      %p99 = por %p97, %p98
      %p100 = scmp.ne.s32.totalorder %s92, %s94
      %p101 = scmp.eq.s32.totalorder %s21, 1
      %p102 = por %p100, %p101
      %p103 = scmp.ne.s32.totalorder %s94, %s95
      %p104 = scmp.eq.s32.totalorder %s21, 0
      %p105 = por %p103, %p104
      %p106 = scmp.ne.s32.totalorder %s94, %s95
      %p107 = scmp.eq.s32.totalorder %s22, 1
      %p108 = por %p106, %p107
      %p110 = scmp.ne.s32.totalorder %s95, %s109
      %p111 = scmp.eq.s32.totalorder %s22, 0
      %p112 = por %p110, %p111
      %s114 = sadd.s32 %s113, 1
      %p117 = scmp.eq.s32.totalorder %s16, 1
      %p118 = scmp.ne.s32.totalorder %s113, %s115
      %p119 = scmp.eq.s32.totalorder %s16, 0
      %p120 = por %p118, %p119
      %p121 = scmp.ne.s32.totalorder %s113, %s115
      %p122 = scmp.eq.s32.totalorder %s21, 1
      %p123 = por %p121, %p122
      %p124 = scmp.ne.s32.totalorder %s115, %s116
      %p125 = scmp.eq.s32.totalorder %s21, 0
      %p126 = por %p124, %p125
      %p127 = scmp.ne.s32.totalorder %s115, %s116
      %p128 = scmp.eq.s32.totalorder %s22, 1
      %p129 = por %p127, %p128
      %p131 = scmp.ne.s32.totalorder %s116, %s130
      %p132 = scmp.eq.s32.totalorder %s22, 0
      %p133 = por %p131, %p132
      %s135 = sadd.s32 %s134, 1
      %p138 = scmp.eq.s32.totalorder %s16, 1
      %p139 = scmp.ne.s32.totalorder %s134, %s136
      %p140 = scmp.eq.s32.totalorder %s16, 0
      %p141 = por %p139, %p140
      %p142 = scmp.ne.s32.totalorder %s134, %s136
      %p143 = scmp.eq.s32.totalorder %s21, 1
      %p144 = por %p142, %p143
      %p145 = scmp.ne.s32.totalorder %s136, %s137
      %p146 = scmp.eq.s32.totalorder %s21, 0
      %p147 = por %p145, %p146
      %p148 = scmp.ne.s32.totalorder %s136, %s137
      %p149 = scmp.eq.s32.totalorder %s22, 1
      %p150 = por %p148, %p149
      %p152 = scmp.ne.s32.totalorder %s137, %s151
      %p153 = scmp.eq.s32.totalorder %s22, 0
      %p154 = por %p152, %p153
      %s156 = sadd.s32 %s155, 1
      %p159 = scmp.eq.s32.totalorder %s16, 1
      %p160 = scmp.ne.s32.totalorder %s155, %s157
      %p161 = scmp.eq.s32.totalorder %s16, 0
      %p162 = por %p160, %p161
      %p163 = scmp.ne.s32.totalorder %s155, %s157
      %p164 = scmp.eq.s32.totalorder %s21, 1
      %p165 = por %p163, %p164
      %p166 = scmp.ne.s32.totalorder %s157, %s158
      %p167 = scmp.eq.s32.totalorder %s21, 0
      %p168 = por %p166, %p167
      %p169 = scmp.ne.s32.totalorder %s157, %s158
      %p170 = scmp.eq.s32.totalorder %s22, 1
      %p171 = por %p169, %p170
      %p173 = scmp.ne.s32.totalorder %s158, %s172
      %p174 = scmp.eq.s32.totalorder %s22, 0
      %p175 = por %p173, %p174
      %s176 = ssub.s32 %s16, %s23
      %p177 = scmp.eq.s32.totalorder %s176, 0
      %s179 = sadd.s32 %s178, 1
      %s180 = scalar_select %p177, %s178, %s179
      %p183 = pneg %p177
      %p184 = scmp.eq.s32.totalorder %s16, 1
      %p185 = por %p183, %p184
      %p186 = scmp.ne.s32.totalorder %s178, %s181
      %p187 = scmp.eq.s32.totalorder %s16, 0
      %p188 = por %p186, %p187
      %p189 = scmp.ne.s32.totalorder %s178, %s181
      %p190 = scmp.eq.s32.totalorder %s21, 1
      %p191 = por %p189, %p190
      %p192 = scmp.ne.s32.totalorder %s181, %s182
      %p193 = scmp.eq.s32.totalorder %s21, 0
      %p194 = por %p192, %p193
      %p195 = scmp.ne.s32.totalorder %s181, %s182
      %p196 = scmp.eq.s32.totalorder %s22, 1
      %p197 = por %p195, %p196
      %p199 = scmp.ne.s32.totalorder %s182, %s198
      %p200 = scmp.eq.s32.totalorder %s22, 0
      %p201 = por %p199, %p200
      %p202 = scmp.le.s32.totalorder 1, %s16
      %p203 = scmp.lt.s32.totalorder %s16, 3
      %p204 = pnand %p202, %p203
      %p205 = pneg %p204
      // Predicated region
      $region9: #{tpu_custom_call.1} parent=5 // pred_check
        _
      $region10: #{tpu_custom_call.1} parent=5 // pred_check_branch
        %207 = sbr.rel (%p204) target = $region12
      $region11: #{tpu_custom_call.1} parent=5 // pred_region
        %s208 = ssub.s32 %s16, 1
        // Predicated region
        $region13: #{tpu_custom_call.1} parent=11 // pred_check
          %p209 = pneg %p63
        $region14: #{tpu_custom_call.1} parent=11 // pred_check_branch
          %211 = sbr.rel (%p209) target = $region16
        $region15: #{tpu_custom_call.1} parent=11 // pred_region
          _
        $region16: #{tpu_custom_call.1} parent=11 // pred_fallthru
          _
        // Predicated region
        $region17: #{tpu_custom_call.1} parent=11 // pred_check
          %p212 = pneg %p84
        $region18: #{tpu_custom_call.1} parent=11 // pred_check_branch
          %214 = sbr.rel (%p212) target = $region20
        $region19: #{tpu_custom_call.1} parent=11 // pred_region
          _
        $region20: #{tpu_custom_call.1} parent=11 // pred_fallthru
          _
        // Predicated region
        $region21: #{tpu_custom_call.1} parent=11 // pred_check
          %p215 = pneg %p105
        $region22: #{tpu_custom_call.1} parent=11 // pred_check_branch
          %217 = sbr.rel (%p215) target = $region24
        $region23: #{tpu_custom_call.1} parent=11 // pred_region
          _
        $region24: #{tpu_custom_call.1} parent=11 // pred_fallthru
          _
        // Predicated region
        $region25: #{tpu_custom_call.1} parent=11 // pred_check
          %p218 = pneg %p126
        $region26: #{tpu_custom_call.1} parent=11 // pred_check_branch
          %220 = sbr.rel (%p218) target = $region28
        $region27: #{tpu_custom_call.1} parent=11 // pred_region
          _
        $region28: #{tpu_custom_call.1} parent=11 // pred_fallthru
          _
        // Predicated region
        $region29: #{tpu_custom_call.1} parent=11 // pred_check
          %p221 = pneg %p147
        $region30: #{tpu_custom_call.1} parent=11 // pred_check_branch
          %223 = sbr.rel (%p221) target = $region32
        $region31: #{tpu_custom_call.1} parent=11 // pred_region
          _
        $region32: #{tpu_custom_call.1} parent=11 // pred_fallthru
          _
        // Predicated region
        $region33: #{tpu_custom_call.1} parent=11 // pred_check
          %p224 = pneg %p168
        $region34: #{tpu_custom_call.1} parent=11 // pred_check_branch
          %226 = sbr.rel (%p224) target = $region36
        $region35: #{tpu_custom_call.1} parent=11 // pred_region
          _
        $region36: #{tpu_custom_call.1} parent=11 // pred_fallthru
          _
      $region12: #{tpu_custom_call.1} parent=5 // pred_fallthru
        _
      %p227 = scmp.lt.s32.totalorder %s16, 2
      // Predicated region
      $region37: #{tpu_custom_call.1} parent=5 // pred_check
        %p228 = pneg %p227
      $region38: #{tpu_custom_call.1} parent=5 // pred_check_branch
        %230 = sbr.rel (%p228) target = $region40
      $region39: #{tpu_custom_call.1} parent=5 // pred_region
        // Predicated region
        $region41: #{tpu_custom_call.1} parent=39 // pred_check
          %p231 = pneg %p36
        $region42: #{tpu_custom_call.1} parent=39 // pred_check_branch
          %233 = sbr.rel (%p231) target = $region44
        $region43: #{tpu_custom_call.1} parent=39 // pred_region
          %s234 = smul.u32 4, %s16
          %p235 = scmp.lt.s32.totalorder %s234, 7
          %s236 = scalar_select %p235, %s234, 7
          %s237 = smul.addr %s236, 4
          %s238 = scalar_lea.vmem %s0, %s237
          %s239 = smul.u32 4, %s16
        $region44: #{tpu_custom_call.1} parent=39 // pred_fallthru
          _
      $region40: #{tpu_custom_call.1} parent=5 // pred_fallthru
        _
      %p240 = scmp.le.s32.totalorder 1, %s16
      %p241 = scmp.lt.s32.totalorder %s16, 3
      %p242 = pnand %p240, %p241
      %p243 = pneg %p242
      // Predicated region
      $region45: #{tpu_custom_call.1} parent=5 // pred_check
        _
      $region46: #{tpu_custom_call.1} parent=5 // pred_check_branch
        %245 = sbr.rel (%p242) target = $region48
      $region47: #{tpu_custom_call.1} parent=5 // pred_region
        %s246 = ssub.s32 %s16, 1
        %s247 = smul.u32 4, %s21
        %p248 = scmp.lt.s32.totalorder %s247, 7
        %s249 = scalar_select %p248, %s247, 7
        %s250 = smul.addr %s249, 4
        %s251 = scalar_lea.vmem %s0, %s250
        %p252 = pneg %p42
        %p253 = pneg %p39
        %p254 = pneg %p63
        %p255 = pneg %p60
        %p256 = pneg %p84
        %p257 = pneg %p81
        %p258 = pneg %p105
        %p259 = pneg %p102
        %p260 = pneg %p126
        %p261 = pneg %p123
        %p262 = pneg %p147
        %p263 = pneg %p144
        %p264 = pneg %p168
        %p265 = pneg %p165
        %p266 = pneg %p194
        %p267 = pneg %p191
        %s268 = sand.u32 %s181, 1
        %s269 = scalar_lea.sflag [#allocation3], %s268
        %s270 = sand.u32 %s181, 1
        %s271 = smul.addr %s270, 16
        %s272 = scalar_lea.vmem [#allocation2], %s271
        %s273 = smul.u32 4, %s21
        %p274 = scmp.lt.s32.totalorder %s273, 7
        %s275 = scalar_select %p274, %s273, 7
        %s276 = smul.addr %s275, 4
        %s277 = scalar_lea.vmem %s0, %s276
        %s278 = smul.u32 4, %s21
        %s279 = smul.u32 4, %s21
        %v280 = vld [vmem:[%s1] sm:$0xff]
        %v281 = vld [vmem:[%s1 + $0x8] sm:$0xff]
        %v282 = vld [vmem:[%s1 + $0x10] sm:$0xff]
        %v283 = vld [vmem:[%s1 + $0x18] sm:$0xff]
        %v284 = vld [vmem:[%s3] sm:$0xff]
        %v285 = vld [vmem:[%s3 + $0x8] sm:$0xff]
        %v286 = vld [vmem:[%s3 + $0x10] sm:$0xff]
        %v287 = vld [vmem:[%s3 + $0x18] sm:$0xff]
        %v288 = vld [vmem:[%s5] sm:$0x7]
        %v289 = vld [vmem:[%s2] sm:$0xff]
        %v290 = vld [vmem:[%s2 + $0x8] sm:$0xff]
        %v291 = vld [vmem:[%s2 + $0x10] sm:$0xff]
        %v292 = vld [vmem:[%s2 + $0x18] sm:$0xff]
        %v293 = vld [vmem:[%s4] sm:$0xff]
        %v294 = vld [vmem:[%s4 + $0x8] sm:$0xff]
        %v295 = vld [vmem:[%s4 + $0x10] sm:$0xff]
        %v296 = vld [vmem:[%s4 + $0x18] sm:$0xff]
        %v297 = vld [vmem:[%s6] sm:$0x7]
        %v298 = vld [vmem:[%s277] sm:$0x77]
        %v299 = vld [vmem:[%s277 + $0x8] sm:$0x77]
        %301 = vset.pattern.permute.xlu0 0
        %302 = vperm.xlu0 %301, %v280
        %v303 = vpop.permute.xlu0 %302
        %306 = vset.pattern.permute.xlu0 0
        %307 = vperm.xlu0 %306, %v281
        %v308 = vpop.permute.xlu0 %307
        %311 = vset.pattern.permute.xlu0 0
        %312 = vperm.xlu0 %311, %v282
        %v313 = vpop.permute.xlu0 %312
        %316 = vset.pattern.permute.xlu0 0
        %317 = vperm.xlu0 %316, %v283
        %v318 = vpop.permute.xlu0 %317
        %v322 = vlaneseq
        %v323 = vshrl.u32 %v322, 7
        %v324 = vsub.s32 0, %v323
        %v325 = vrot.slane %v298, %v324
        %v326 = vlaneseq
        %v327 = vshrl.u32 %v326, 7
        %v328 = vsub.s32 4, %v327
        %v329 = vrot.slane %v298, %v328
        %v330 = vlaneseq
        %v331 = vshrl.u32 %v330, 7
        %v332 = vsub.s32 0, %v331
        %v333 = vrot.slane %v299, %v332
        %v334 = vlaneseq
        %v335 = vshrl.u32 %v334, 7
        %v336 = vsub.s32 4, %v335
        %v337 = vrot.slane %v299, %v336
        %v342 = vlaneseq
        %v343 = vshrl.u32 %v342, 7
        %v344 = vsub.s32 0, %v343
        %v345 = vrot.slane %v325, %v344
        %v346 = vlaneseq
        %v347 = vshrl.u32 %v346, 7
        %v348 = vsub.s32 0, %v347
        %v349 = vrot.slane %v329, %v348
        %v350 = vlaneseq
        %v351 = vshrl.u32 %v350, 7
        %v352 = vsub.s32 0, %v351
        %v353 = vrot.slane %v333, %v352
        %v354 = vlaneseq
        %v355 = vshrl.u32 %v354, 7
        %v356 = vsub.s32 0, %v355
        %v357 = vrot.slane %v337, %v356
        %v358 = vmul.f32 %v303, %v345
        %v359 = vmul.f32 %v303, %v349
        %v360 = vmul.f32 %v303, %v353
        %v361 = vmul.f32 %v303, %v357
        %v362 = vmul.f32 %v308, %v345
        %v363 = vmul.f32 %v308, %v349
        %v364 = vmul.f32 %v308, %v353
        %v365 = vmul.f32 %v308, %v357
        %v366 = vmul.f32 %v313, %v345
        %v367 = vmul.f32 %v313, %v349
        %v368 = vmul.f32 %v313, %v353
        %v369 = vmul.f32 %v313, %v357
        %v370 = vmul.f32 %v318, %v345
        %v371 = vmul.f32 %v318, %v349
        %v372 = vmul.f32 %v318, %v353
        %v373 = vmul.f32 %v318, %v357
        %375 = vset.pattern.permute.xlu0 0
        %376 = vperm.xlu0 %375, %v289
        %v377 = vpop.permute.xlu0 %376
        %380 = vset.pattern.permute.xlu0 0
        %381 = vperm.xlu0 %380, %v290
        %v382 = vpop.permute.xlu0 %381
        %385 = vset.pattern.permute.xlu0 0
        %386 = vperm.xlu0 %385, %v291
        %v387 = vpop.permute.xlu0 %386
        %390 = vset.pattern.permute.xlu0 0
        %391 = vperm.xlu0 %390, %v292
        %v392 = vpop.permute.xlu0 %391
        %v394 = vadd.f32 %v358, %v377
        %v395 = vadd.f32 %v359, %v377
        %v396 = vadd.f32 %v360, %v377
        %v397 = vadd.f32 %v361, %v377
        %v398 = vadd.f32 %v362, %v382
        %v399 = vadd.f32 %v363, %v382
        %v400 = vadd.f32 %v364, %v382
        %v401 = vadd.f32 %v365, %v382
        %v402 = vadd.f32 %v366, %v387
        %v403 = vadd.f32 %v367, %v387
        %v404 = vadd.f32 %v368, %v387
        %v405 = vadd.f32 %v369, %v387
        %v406 = vadd.f32 %v370, %v392
        %v407 = vadd.f32 %v371, %v392
        %v408 = vadd.f32 %v372, %v392
        %v409 = vadd.f32 %v373, %v392
        %410 = vset.pattern.permute.xlu0 1
        %411 = vperm.xlu0 %410, %v280
        %v412 = vpop.permute.xlu0 %411
        %414 = vset.pattern.permute.xlu0 1
        %415 = vperm.xlu0 %414, %v281
        %v416 = vpop.permute.xlu0 %415
        %418 = vset.pattern.permute.xlu0 1
        %419 = vperm.xlu0 %418, %v282
        %v420 = vpop.permute.xlu0 %419
        %422 = vset.pattern.permute.xlu0 1
        %423 = vperm.xlu0 %422, %v283
        %v424 = vpop.permute.xlu0 %423
        %v426 = vlaneseq
        %v427 = vshrl.u32 %v426, 7
        %v428 = vsub.s32 1, %v427
        %v429 = vrot.slane %v298, %v428
        %v430 = vlaneseq
        %v431 = vshrl.u32 %v430, 7
        %v432 = vsub.s32 5, %v431
        %v433 = vrot.slane %v298, %v432
        %v434 = vlaneseq
        %v435 = vshrl.u32 %v434, 7
        %v436 = vsub.s32 1, %v435
        %v437 = vrot.slane %v299, %v436
        %v438 = vlaneseq
        %v439 = vshrl.u32 %v438, 7
        %v440 = vsub.s32 5, %v439
        %v441 = vrot.slane %v299, %v440
        %v446 = vlaneseq
        %v447 = vshrl.u32 %v446, 7
        %v448 = vsub.s32 1, %v447
        %v449 = vrot.slane %v429, %v448
        %v450 = vlaneseq
        %v451 = vshrl.u32 %v450, 7
        %v452 = vsub.s32 1, %v451
        %v453 = vrot.slane %v433, %v452
        %v454 = vlaneseq
        %v455 = vshrl.u32 %v454, 7
        %v456 = vsub.s32 1, %v455
        %v457 = vrot.slane %v437, %v456
        %v458 = vlaneseq
        %v459 = vshrl.u32 %v458, 7
        %v460 = vsub.s32 1, %v459
        %v461 = vrot.slane %v441, %v460
        %v462 = vmul.f32 %v412, %v449
        %v463 = vmul.f32 %v412, %v453
        %v464 = vmul.f32 %v412, %v457
        %v465 = vmul.f32 %v412, %v461
        %v466 = vmul.f32 %v416, %v449
        %v467 = vmul.f32 %v416, %v453
        %v468 = vmul.f32 %v416, %v457
        %v469 = vmul.f32 %v416, %v461
        %v470 = vmul.f32 %v420, %v449
        %v471 = vmul.f32 %v420, %v453
        %v472 = vmul.f32 %v420, %v457
        %v473 = vmul.f32 %v420, %v461
        %v474 = vmul.f32 %v424, %v449
        %v475 = vmul.f32 %v424, %v453
        %v476 = vmul.f32 %v424, %v457
        %v477 = vmul.f32 %v424, %v461
        %v478 = vadd.f32 %v394, %v462
        %v479 = vadd.f32 %v395, %v463
        %v480 = vadd.f32 %v396, %v464
        %v481 = vadd.f32 %v397, %v465
        %v482 = vadd.f32 %v398, %v466
        %v483 = vadd.f32 %v399, %v467
        %v484 = vadd.f32 %v400, %v468
        %v485 = vadd.f32 %v401, %v469
        %v486 = vadd.f32 %v402, %v470
        %v487 = vadd.f32 %v403, %v471
        %v488 = vadd.f32 %v404, %v472
        %v489 = vadd.f32 %v405, %v473
        %v490 = vadd.f32 %v406, %v474
        %v491 = vadd.f32 %v407, %v475
        %v492 = vadd.f32 %v408, %v476
        %v493 = vadd.f32 %v409, %v477
        %494 = vset.pattern.permute.xlu0 2
        %495 = vperm.xlu0 %494, %v280
        %v496 = vpop.permute.xlu0 %495
        %498 = vset.pattern.permute.xlu0 2
        %499 = vperm.xlu0 %498, %v281
        %v500 = vpop.permute.xlu0 %499
        %502 = vset.pattern.permute.xlu0 2
        %503 = vperm.xlu0 %502, %v282
        %v504 = vpop.permute.xlu0 %503
        %506 = vset.pattern.permute.xlu0 2
        %507 = vperm.xlu0 %506, %v283
        %v508 = vpop.permute.xlu0 %507
        %v510 = vlaneseq
        %v511 = vshrl.u32 %v510, 7
        %v512 = vsub.s32 2, %v511
        %v513 = vrot.slane %v298, %v512
        %v514 = vlaneseq
        %v515 = vshrl.u32 %v514, 7
        %v516 = vsub.s32 6, %v515
        %v517 = vrot.slane %v298, %v516
        %v518 = vlaneseq
        %v519 = vshrl.u32 %v518, 7
        %v520 = vsub.s32 2, %v519
        %v521 = vrot.slane %v299, %v520
        %v522 = vlaneseq
        %v523 = vshrl.u32 %v522, 7
        %v524 = vsub.s32 6, %v523
        %v525 = vrot.slane %v299, %v524
        %v530 = vlaneseq
        %v531 = vshrl.u32 %v530, 7
        %v532 = vsub.s32 2, %v531
        %v533 = vrot.slane %v513, %v532
        %v534 = vlaneseq
        %v535 = vshrl.u32 %v534, 7
        %v536 = vsub.s32 2, %v535
        %v537 = vrot.slane %v517, %v536
        %v538 = vlaneseq
        %v539 = vshrl.u32 %v538, 7
        %v540 = vsub.s32 2, %v539
        %v541 = vrot.slane %v521, %v540
        %v542 = vlaneseq
        %v543 = vshrl.u32 %v542, 7
        %v544 = vsub.s32 2, %v543
        %v545 = vrot.slane %v525, %v544
        %v546 = vmul.f32 %v496, %v533
        %v547 = vmul.f32 %v496, %v537
        %v548 = vmul.f32 %v496, %v541
        %v549 = vmul.f32 %v496, %v545
        %v550 = vmul.f32 %v500, %v533
        %v551 = vmul.f32 %v500, %v537
        %v552 = vmul.f32 %v500, %v541
        %v553 = vmul.f32 %v500, %v545
        %v554 = vmul.f32 %v504, %v533
        %v555 = vmul.f32 %v504, %v537
        %v556 = vmul.f32 %v504, %v541
        %v557 = vmul.f32 %v504, %v545
        %v558 = vmul.f32 %v508, %v533
        %v559 = vmul.f32 %v508, %v537
        %v560 = vmul.f32 %v508, %v541
        %v561 = vmul.f32 %v508, %v545
        %v562 = vadd.f32 %v478, %v546
        %v563 = vadd.f32 %v479, %v547
        %v564 = vadd.f32 %v480, %v548
        %v565 = vadd.f32 %v481, %v549
        %v566 = vadd.f32 %v482, %v550
        %v567 = vadd.f32 %v483, %v551
        %v568 = vadd.f32 %v484, %v552
        %v569 = vadd.f32 %v485, %v553
        %v570 = vadd.f32 %v486, %v554
        %v571 = vadd.f32 %v487, %v555
        %v572 = vadd.f32 %v488, %v556
        %v573 = vadd.f32 %v489, %v557
        %v574 = vadd.f32 %v490, %v558
        %v575 = vadd.f32 %v491, %v559
        %v576 = vadd.f32 %v492, %v560
        %v577 = vadd.f32 %v493, %v561
        %v578 = vmul.f32 %v562, 100.0
        %v579 = vmul.f32 %v563, 100.0
        %v580 = vmul.f32 %v564, 100.0
        %v581 = vmul.f32 %v565, 100.0
        %v582 = vmul.f32 %v566, 100.0
        %v583 = vmul.f32 %v567, 100.0
        %v584 = vmul.f32 %v568, 100.0
        %v585 = vmul.f32 %v569, 100.0
        %v586 = vmul.f32 %v570, 100.0
        %v587 = vmul.f32 %v571, 100.0
        %v588 = vmul.f32 %v572, 100.0
        %v589 = vmul.f32 %v573, 100.0
        %v590 = vmul.f32 %v574, 100.0
        %v591 = vmul.f32 %v575, 100.0
        %v592 = vmul.f32 %v576, 100.0
        %v593 = vmul.f32 %v577, 100.0
        %v594 = vmin.f32 %v578, 20.0
        %v595 = vmin.f32 %v579, 20.0
        %v596 = vmin.f32 %v580, 20.0
        %v597 = vmin.f32 %v581, 20.0
        %v598 = vmin.f32 %v582, 20.0
        %v599 = vmin.f32 %v583, 20.0
        %v600 = vmin.f32 %v584, 20.0
        %v601 = vmin.f32 %v585, 20.0
        %v602 = vmin.f32 %v586, 20.0
        %v603 = vmin.f32 %v587, 20.0
        %v604 = vmin.f32 %v588, 20.0
        %v605 = vmin.f32 %v589, 20.0
        %v606 = vmin.f32 %v590, 20.0
        %v607 = vmin.f32 %v591, 20.0
        %v608 = vmin.f32 %v592, 20.0
        %v609 = vmin.f32 %v593, 20.0
        %vm610 = vcmp.gt.f32.partialorder %v578, 20.0
        %vm611 = vcmp.gt.f32.partialorder %v579, 20.0
        %vm612 = vcmp.gt.f32.partialorder %v580, 20.0
        %vm613 = vcmp.gt.f32.partialorder %v581, 20.0
        %vm614 = vcmp.gt.f32.partialorder %v582, 20.0
        %vm615 = vcmp.gt.f32.partialorder %v583, 20.0
        %vm616 = vcmp.gt.f32.partialorder %v584, 20.0
        %vm617 = vcmp.gt.f32.partialorder %v585, 20.0
        %vm618 = vcmp.gt.f32.partialorder %v586, 20.0
        %vm619 = vcmp.gt.f32.partialorder %v587, 20.0
        %vm620 = vcmp.gt.f32.partialorder %v588, 20.0
        %vm621 = vcmp.gt.f32.partialorder %v589, 20.0
        %vm622 = vcmp.gt.f32.partialorder %v590, 20.0
        %vm623 = vcmp.gt.f32.partialorder %v591, 20.0
        %vm624 = vcmp.gt.f32.partialorder %v592, 20.0
        %vm625 = vcmp.gt.f32.partialorder %v593, 20.0
        %v626 = vmul.f32 %v594, 1.442695
        %v627 = vpow.pop %v626
        %v628 = vmul.f32 %v595, 1.442695
        %v629 = vpow.pop %v628
        %v630 = vmul.f32 %v596, 1.442695
        %v631 = vpow.pop %v630
        %v632 = vmul.f32 %v597, 1.442695
        %v633 = vpow.pop %v632
        %v634 = vmul.f32 %v598, 1.442695
        %v635 = vpow.pop %v634
        %v636 = vmul.f32 %v599, 1.442695
        %v637 = vpow.pop %v636
        %v638 = vmul.f32 %v600, 1.442695
        %v639 = vpow.pop %v638
        %v640 = vmul.f32 %v601, 1.442695
        %v641 = vpow.pop %v640
        %v642 = vmul.f32 %v602, 1.442695
        %v643 = vpow.pop %v642
        %v644 = vmul.f32 %v603, 1.442695
        %v645 = vpow.pop %v644
        %v646 = vmul.f32 %v604, 1.442695
        %v647 = vpow.pop %v646
        %v648 = vmul.f32 %v605, 1.442695
        %v649 = vpow.pop %v648
        %v650 = vmul.f32 %v606, 1.442695
        %v651 = vpow.pop %v650
        %v652 = vmul.f32 %v607, 1.442695
        %v653 = vpow.pop %v652
        %v654 = vmul.f32 %v608, 1.442695
        %v655 = vpow.pop %v654
        %v656 = vmul.f32 %v609, 1.442695
        %v657 = vpow.pop %v656
        %v658 = vadd.f32 %v627, 1.0
        %v659 = vlog2.pop %v658
        %v660 = vmul.f32 %v659, 0.6931472
        %v661 = vmul.f32 -0.5, %v627
        %v662 = vadd.f32 %v661, 1.0
        %v663 = vmul.f32 %v662, %v627
        %v664 = vand.u32 2147483647, %v627
        %vm665 = vcmp.lt.f32.partialorder %v664, 0.0004427343
        %v666 = vsel %vm665, %v663, %v660
        %v667 = vadd.f32 %v629, 1.0
        %v668 = vlog2.pop %v667
        %v669 = vmul.f32 %v668, 0.6931472
        %v670 = vmul.f32 -0.5, %v629
        %v671 = vadd.f32 %v670, 1.0
        %v672 = vmul.f32 %v671, %v629
        %v673 = vand.u32 2147483647, %v629
        %vm674 = vcmp.lt.f32.partialorder %v673, 0.0004427343
        %v675 = vsel %vm674, %v672, %v669
        %v676 = vadd.f32 %v631, 1.0
        %v677 = vlog2.pop %v676
        %v678 = vmul.f32 %v677, 0.6931472
        %v679 = vmul.f32 -0.5, %v631
        %v680 = vadd.f32 %v679, 1.0
        %v681 = vmul.f32 %v680, %v631
        %v682 = vand.u32 2147483647, %v631
        %vm683 = vcmp.lt.f32.partialorder %v682, 0.0004427343
        %v684 = vsel %vm683, %v681, %v678
        %v685 = vadd.f32 %v633, 1.0
        %v686 = vlog2.pop %v685
        %v687 = vmul.f32 %v686, 0.6931472
        %v688 = vmul.f32 -0.5, %v633
        %v689 = vadd.f32 %v688, 1.0
        %v690 = vmul.f32 %v689, %v633
        %v691 = vand.u32 2147483647, %v633
        %vm692 = vcmp.lt.f32.partialorder %v691, 0.0004427343
        %v693 = vsel %vm692, %v690, %v687
        %v694 = vadd.f32 %v635, 1.0
        %v695 = vlog2.pop %v694
        %v696 = vmul.f32 %v695, 0.6931472
        %v697 = vmul.f32 -0.5, %v635
        %v698 = vadd.f32 %v697, 1.0
        %v699 = vmul.f32 %v698, %v635
        %v700 = vand.u32 2147483647, %v635
        %vm701 = vcmp.lt.f32.partialorder %v700, 0.0004427343
        %v702 = vsel %vm701, %v699, %v696
        %v703 = vadd.f32 %v637, 1.0
        %v704 = vlog2.pop %v703
        %v705 = vmul.f32 %v704, 0.6931472
        %v706 = vmul.f32 -0.5, %v637
        %v707 = vadd.f32 %v706, 1.0
        %v708 = vmul.f32 %v707, %v637
        %v709 = vand.u32 2147483647, %v637
        %vm710 = vcmp.lt.f32.partialorder %v709, 0.0004427343
        %v711 = vsel %vm710, %v708, %v705
        %v712 = vadd.f32 %v639, 1.0
        %v713 = vlog2.pop %v712
        %v714 = vmul.f32 %v713, 0.6931472
        %v715 = vmul.f32 -0.5, %v639
        %v716 = vadd.f32 %v715, 1.0
        %v717 = vmul.f32 %v716, %v639
        %v718 = vand.u32 2147483647, %v639
        %vm719 = vcmp.lt.f32.partialorder %v718, 0.0004427343
        %v720 = vsel %vm719, %v717, %v714
        %v721 = vadd.f32 %v641, 1.0
        %v722 = vlog2.pop %v721
        %v723 = vmul.f32 %v722, 0.6931472
        %v724 = vmul.f32 -0.5, %v641
        %v725 = vadd.f32 %v724, 1.0
        %v726 = vmul.f32 %v725, %v641
        %v727 = vand.u32 2147483647, %v641
        %vm728 = vcmp.lt.f32.partialorder %v727, 0.0004427343
        %v729 = vsel %vm728, %v726, %v723
        %v730 = vadd.f32 %v643, 1.0
        %v731 = vlog2.pop %v730
        %v732 = vmul.f32 %v731, 0.6931472
        %v733 = vmul.f32 -0.5, %v643
        %v734 = vadd.f32 %v733, 1.0
        %v735 = vmul.f32 %v734, %v643
        %v736 = vand.u32 2147483647, %v643
        %vm737 = vcmp.lt.f32.partialorder %v736, 0.0004427343
        %v738 = vsel %vm737, %v735, %v732
        %v739 = vadd.f32 %v645, 1.0
        %v740 = vlog2.pop %v739
        %v741 = vmul.f32 %v740, 0.6931472
        %v742 = vmul.f32 -0.5, %v645
        %v743 = vadd.f32 %v742, 1.0
        %v744 = vmul.f32 %v743, %v645
        %v745 = vand.u32 2147483647, %v645
        %vm746 = vcmp.lt.f32.partialorder %v745, 0.0004427343
        %v747 = vsel %vm746, %v744, %v741
        %v748 = vadd.f32 %v647, 1.0
        %v749 = vlog2.pop %v748
        %v750 = vmul.f32 %v749, 0.6931472
        %v751 = vmul.f32 -0.5, %v647
        %v752 = vadd.f32 %v751, 1.0
        %v753 = vmul.f32 %v752, %v647
        %v754 = vand.u32 2147483647, %v647
        %vm755 = vcmp.lt.f32.partialorder %v754, 0.0004427343
        %v756 = vsel %vm755, %v753, %v750
        %v757 = vadd.f32 %v649, 1.0
        %v758 = vlog2.pop %v757
        %v759 = vmul.f32 %v758, 0.6931472
        %v760 = vmul.f32 -0.5, %v649
        %v761 = vadd.f32 %v760, 1.0
        %v762 = vmul.f32 %v761, %v649
        %v763 = vand.u32 2147483647, %v649
        %vm764 = vcmp.lt.f32.partialorder %v763, 0.0004427343
        %v765 = vsel %vm764, %v762, %v759
        %v766 = vadd.f32 %v651, 1.0
        %v767 = vlog2.pop %v766
        %v768 = vmul.f32 %v767, 0.6931472
        %v769 = vmul.f32 -0.5, %v651
        %v770 = vadd.f32 %v769, 1.0
        %v771 = vmul.f32 %v770, %v651
        %v772 = vand.u32 2147483647, %v651
        %vm773 = vcmp.lt.f32.partialorder %v772, 0.0004427343
        %v774 = vsel %vm773, %v771, %v768
        %v775 = vadd.f32 %v653, 1.0
        %v776 = vlog2.pop %v775
        %v777 = vmul.f32 %v776, 0.6931472
        %v778 = vmul.f32 -0.5, %v653
        %v779 = vadd.f32 %v778, 1.0
        %v780 = vmul.f32 %v779, %v653
        %v781 = vand.u32 2147483647, %v653
        %vm782 = vcmp.lt.f32.partialorder %v781, 0.0004427343
        %v783 = vsel %vm782, %v780, %v777
        %v784 = vadd.f32 %v655, 1.0
        %v785 = vlog2.pop %v784
        %v786 = vmul.f32 %v785, 0.6931472
        %v787 = vmul.f32 -0.5, %v655
        %v788 = vadd.f32 %v787, 1.0
        %v789 = vmul.f32 %v788, %v655
        %v790 = vand.u32 2147483647, %v655
        %vm791 = vcmp.lt.f32.partialorder %v790, 0.0004427343
        %v792 = vsel %vm791, %v789, %v786
        %v793 = vadd.f32 %v657, 1.0
        %v794 = vlog2.pop %v793
        %v795 = vmul.f32 %v794, 0.6931472
        %v796 = vmul.f32 -0.5, %v657
        %v797 = vadd.f32 %v796, 1.0
        %v798 = vmul.f32 %v797, %v657
        %v799 = vand.u32 2147483647, %v657
        %vm800 = vcmp.lt.f32.partialorder %v799, 0.0004427343
        %v801 = vsel %vm800, %v798, %v795
        %v802 = vrcp.pop 100.0
        %v803 = vmul.f32 %v666, %v802
        %v804 = vmul.f32 %v675, %v802
        %v805 = vmul.f32 %v684, %v802
        %v806 = vmul.f32 %v693, %v802
        %v807 = vmul.f32 %v702, %v802
        %v808 = vmul.f32 %v711, %v802
        %v809 = vmul.f32 %v720, %v802
        %v810 = vmul.f32 %v729, %v802
        %v811 = vmul.f32 %v738, %v802
        %v812 = vmul.f32 %v747, %v802
        %v813 = vmul.f32 %v756, %v802
        %v814 = vmul.f32 %v765, %v802
        %v815 = vmul.f32 %v774, %v802
        %v816 = vmul.f32 %v783, %v802
        %v817 = vmul.f32 %v792, %v802
        %v818 = vmul.f32 %v801, %v802
        %v819 = vsel %vm610, %v562, %v803
        %v820 = vsel %vm611, %v563, %v804
        %v821 = vsel %vm612, %v564, %v805
        %v822 = vsel %vm613, %v565, %v806
        %v823 = vsel %vm614, %v566, %v807
        %v824 = vsel %vm615, %v567, %v808
        %v825 = vsel %vm616, %v568, %v809
        %v826 = vsel %vm617, %v569, %v810
        %v827 = vsel %vm618, %v570, %v811
        %v828 = vsel %vm619, %v571, %v812
        %v829 = vsel %vm620, %v572, %v813
        %v830 = vsel %vm621, %v573, %v814
        %v831 = vsel %vm622, %v574, %v815
        %v832 = vsel %vm623, %v575, %v816
        %v833 = vsel %vm624, %v576, %v817
        %v834 = vsel %vm625, %v577, %v818
        %836 = vset.pattern.permute.xlu0 0
        %837 = vperm.xlu0 %836, %v293
        %v838 = vpop.permute.xlu0 %837
        %841 = vset.pattern.permute.xlu0 0
        %842 = vperm.xlu0 %841, %v294
        %v843 = vpop.permute.xlu0 %842
        %846 = vset.pattern.permute.xlu0 0
        %847 = vperm.xlu0 %846, %v295
        %v848 = vpop.permute.xlu0 %847
        %851 = vset.pattern.permute.xlu0 0
        %852 = vperm.xlu0 %851, %v296
        %v853 = vpop.permute.xlu0 %852
        %vm855 = vcmask 261120
        %v857 = vsel %vm855, %v284, 0
        %v860 = vsel %vm855, %v285, 0
        %v863 = vsel %vm855, %v286, 0
        %v866 = vsel %vm855, %v287, 0
        %868 = vmatprep.subr.mxu0 %v820
        %869 = vmatpush1.msra.mxu0 %v819
        %870 = vmatprep.subr.mxu0 %v824
        %871 = vmatpush1.msra.mxu0 %v823
        %872 = vmatprep.subr.mxu0 %v828
        %873 = vmatpush1.msra.mxu0 %v827
        %874 = vmatprep.subr.mxu0 %v832
        %875 = vmatpush1.msra.mxu0 %v831
        %876 = vmatprep.subr.mxu0 0.0
        %877 = vmatpush1.msra.mxu0 0.0
        %878 = vmatprep.subr.mxu0 0.0
        %879 = vmatpush1.msra.mxu0 0.0
        %880 = vmatprep.subr.mxu0 0.0
        %881 = vmatpush1.msra.mxu0 0.0
        %882 = vmatprep.subr.mxu0 0.0
        %883 = vmatpush1.msra.mxu0 0.0
        %884 = vmatprep.subr.mxu0 0.0
        %885 = vmatpush1.msra.mxu0 0.0
        %886 = vmatprep.subr.mxu0 0.0
        %887 = vmatpush1.msra.mxu0 0.0
        %888 = vmatprep.subr.mxu0 0.0
        %889 = vmatpush1.msra.mxu0 0.0
        %890 = vmatprep.subr.mxu0 0.0
        %891 = vmatpush1.msra.mxu0 0.0
        %892 = vmatprep.subr.mxu0 0.0
        %893 = vmatpush1.msra.mxu0 0.0
        %894 = vmatprep.subr.mxu0 0.0
        %895 = vmatpush1.msra.mxu0 0.0
        %896 = vmatprep.subr.mxu0 0.0
        %897 = vmatpush1.msra.mxu0 0.0
        %898 = vmatprep.subr.mxu0 0.0
        %899 = vmatpush1.msra.mxu0 0.0
        %900 = vmatprep.subr.mxu0 0.0
        %901 = vmatpush1.msra.mxu0 0.0
        %902 = vmatprep.subr.mxu0 0.0
        %903 = vmatpush1.msra.mxu0 0.0
        %904 = vmatprep.subr.mxu0 0.0
        %905 = vmatpush1.msra.mxu0 0.0
        %906 = vmatprep.subr.mxu0 0.0
        %907 = vmatpush1.msra.mxu0 0.0
        %908 = vmatprep.subr.mxu0 0.0
        %909 = vmatpush1.msra.mxu0 0.0
        %910 = vmatprep.subr.mxu0 0.0
        %911 = vmatpush1.msra.mxu0 0.0
        %912 = vmatprep.subr.mxu0 0.0
        %913 = vmatpush1.msra.mxu0 0.0
        %914 = vmatprep.subr.mxu0 0.0
        %915 = vmatpush1.msra.mxu0 0.0
        %916 = vmatprep.subr.mxu0 0.0
        %917 = vmatpush1.msra.mxu0 0.0
        %918 = vmatprep.subr.mxu0 0.0
        %919 = vmatpush1.msra.mxu0 0.0
        %920 = vmatprep.subr.mxu0 0.0
        %921 = vmatpush1.msra.mxu0 0.0
        %922 = vmatprep.subr.mxu0 0.0
        %923 = vmatpush1.msra.mxu0 0.0
        %924 = vmatprep.subr.mxu0 0.0
        %925 = vmatpush1.msra.mxu0 0.0
        %926 = vmatprep.subr.mxu0 0.0
        %927 = vmatpush1.msra.mxu0 0.0
        %928 = vmatprep.subr.mxu0 0.0
        %929 = vmatpush1.msra.mxu0 0.0
        %930 = vmatprep.subr.mxu0 0.0
        %931 = vmatpush1.msra.mxu0 0.0
        %932 = vmatprep.mubr.f32.mxu0 0.0
        %933 = vmatmul.mubr.f32.gmra.mrb[0].mxu0 %v857
        %v934 = vpop.f32.mrb[0].mxu0
        %v935 = vadd.f32 %v838, %v934
        %v936 = vpop.f32.mrb[0].mxu0
        %v937 = vadd.f32 %v838, %v936
        %938 = vmatprep.mubr.f32.mxu0 0.0
        %939 = vmatmul.mubr.f32.gmra.mrb[0].mxu0 %v860
        %v940 = vpop.f32.mrb[0].mxu0
        %v941 = vadd.f32 %v843, %v940
        %v942 = vpop.f32.mrb[0].mxu0
        %v943 = vadd.f32 %v843, %v942
        %944 = vmatprep.mubr.f32.mxu0 0.0
        %945 = vmatmul.mubr.f32.gmra.mrb[0].mxu0 %v863
        %v946 = vpop.f32.mrb[0].mxu0
        %v947 = vadd.f32 %v848, %v946
        %v948 = vpop.f32.mrb[0].mxu0
        %v949 = vadd.f32 %v848, %v948
        %950 = vmatprep.mubr.f32.mxu0 0.0
        %951 = vmatmul.mubr.f32.gmra.mrb[0].mxu0 %v866
        %v952 = vpop.f32.mrb[0].mxu0
        %v953 = vadd.f32 %v853, %v952
        %v954 = vpop.f32.mrb[0].mxu0
        %v955 = vadd.f32 %v853, %v954
        %956 = vdwg.mxu0
        %957 = vmatprep.subr.mxu0 %v822
        %958 = vmatpush1.msra.mxu0 %v821
        %959 = vmatprep.subr.mxu0 %v826
        %960 = vmatpush1.msra.mxu0 %v825
        %961 = vmatprep.subr.mxu0 %v830
        %962 = vmatpush1.msra.mxu0 %v829
        %963 = vmatprep.subr.mxu0 %v834
        %964 = vmatpush1.msra.mxu0 %v833
        %965 = vmatprep.subr.mxu0 0.0
        %966 = vmatpush1.msra.mxu0 0.0
        %967 = vmatprep.subr.mxu0 0.0
        %968 = vmatpush1.msra.mxu0 0.0
        %969 = vmatprep.subr.mxu0 0.0
        %970 = vmatpush1.msra.mxu0 0.0
        %971 = vmatprep.subr.mxu0 0.0
        %972 = vmatpush1.msra.mxu0 0.0
        %973 = vmatprep.subr.mxu0 0.0
        %974 = vmatpush1.msra.mxu0 0.0
        %975 = vmatprep.subr.mxu0 0.0
        %976 = vmatpush1.msra.mxu0 0.0
        %977 = vmatprep.subr.mxu0 0.0
        %978 = vmatpush1.msra.mxu0 0.0
        %979 = vmatprep.subr.mxu0 0.0
        %980 = vmatpush1.msra.mxu0 0.0
        %981 = vmatprep.subr.mxu0 0.0
        %982 = vmatpush1.msra.mxu0 0.0
        %983 = vmatprep.subr.mxu0 0.0
        %984 = vmatpush1.msra.mxu0 0.0
        %985 = vmatprep.subr.mxu0 0.0
        %986 = vmatpush1.msra.mxu0 0.0
        %987 = vmatprep.subr.mxu0 0.0
        %988 = vmatpush1.msra.mxu0 0.0
        %989 = vmatprep.subr.mxu0 0.0
        %990 = vmatpush1.msra.mxu0 0.0
        %991 = vmatprep.subr.mxu0 0.0
        %992 = vmatpush1.msra.mxu0 0.0
        %993 = vmatprep.subr.mxu0 0.0
        %994 = vmatpush1.msra.mxu0 0.0
        %995 = vmatprep.subr.mxu0 0.0
        %996 = vmatpush1.msra.mxu0 0.0
        %997 = vmatprep.subr.mxu0 0.0
        %998 = vmatpush1.msra.mxu0 0.0
        %999 = vmatprep.subr.mxu0 0.0
        %1000 = vmatpush1.msra.mxu0 0.0
        %1001 = vmatprep.subr.mxu0 0.0
        %1002 = vmatpush1.msra.mxu0 0.0
        %1003 = vmatprep.subr.mxu0 0.0
        %1004 = vmatpush1.msra.mxu0 0.0
        %1005 = vmatprep.subr.mxu0 0.0
        %1006 = vmatpush1.msra.mxu0 0.0
        %1007 = vmatprep.subr.mxu0 0.0
        %1008 = vmatpush1.msra.mxu0 0.0
        %1009 = vmatprep.subr.mxu0 0.0
        %1010 = vmatpush1.msra.mxu0 0.0
        %1011 = vmatprep.subr.mxu0 0.0
        %1012 = vmatpush1.msra.mxu0 0.0
        %1013 = vmatprep.subr.mxu0 0.0
        %1014 = vmatpush1.msra.mxu0 0.0
        %1015 = vmatprep.subr.mxu0 0.0
        %1016 = vmatpush1.msra.mxu0 0.0
        %1017 = vmatprep.subr.mxu0 0.0
        %1018 = vmatpush1.msra.mxu0 0.0
        %1019 = vmatprep.subr.mxu0 0.0
        %1020 = vmatpush1.msra.mxu0 0.0
        %1021 = vmatprep.mubr.f32.mxu0 0.0
        %1022 = vmatmul.mubr.f32.gmra.mrb[0].mxu0 %v857
        %v1023 = vpop.f32.mrb[0].mxu0
        %v1024 = vadd.f32 %v838, %v1023
        %v1025 = vpop.f32.mrb[0].mxu0
        %v1026 = vadd.f32 %v838, %v1025
        %1027 = vmatprep.mubr.f32.mxu0 0.0
        %1028 = vmatmul.mubr.f32.gmra.mrb[0].mxu0 %v860
        %v1029 = vpop.f32.mrb[0].mxu0
        %v1030 = vadd.f32 %v843, %v1029
        %v1031 = vpop.f32.mrb[0].mxu0
        %v1032 = vadd.f32 %v843, %v1031
        %1033 = vmatprep.mubr.f32.mxu0 0.0
        %1034 = vmatmul.mubr.f32.gmra.mrb[0].mxu0 %v863
        %v1035 = vpop.f32.mrb[0].mxu0
        %v1036 = vadd.f32 %v848, %v1035
        %v1037 = vpop.f32.mrb[0].mxu0
        %v1038 = vadd.f32 %v848, %v1037
        %1039 = vmatprep.mubr.f32.mxu0 0.0
        %1040 = vmatmul.mubr.f32.gmra.mrb[0].mxu0 %v866
        %v1041 = vpop.f32.mrb[0].mxu0
        %v1042 = vadd.f32 %v853, %v1041
        %v1043 = vpop.f32.mrb[0].mxu0
        %v1044 = vadd.f32 %v853, %v1043
        %1045 = vdwg.mxu0
        %v1046 = vmul.f32 %v935, 100.0
        %v1047 = vmul.f32 %v937, 100.0
        %v1048 = vmul.f32 %v1024, 100.0
        %v1049 = vmul.f32 %v1026, 100.0
        %v1050 = vmul.f32 %v941, 100.0
        %v1051 = vmul.f32 %v943, 100.0
        %v1052 = vmul.f32 %v1030, 100.0
        %v1053 = vmul.f32 %v1032, 100.0
        %v1054 = vmul.f32 %v947, 100.0
        %v1055 = vmul.f32 %v949, 100.0
        %v1056 = vmul.f32 %v1036, 100.0
        %v1057 = vmul.f32 %v1038, 100.0
        %v1058 = vmul.f32 %v953, 100.0
        %v1059 = vmul.f32 %v955, 100.0
        %v1060 = vmul.f32 %v1042, 100.0
        %v1061 = vmul.f32 %v1044, 100.0
        %v1062 = vmin.f32 %v1046, 20.0
        %v1063 = vmin.f32 %v1047, 20.0
        %v1064 = vmin.f32 %v1048, 20.0
        %v1065 = vmin.f32 %v1049, 20.0
        %v1066 = vmin.f32 %v1050, 20.0
        %v1067 = vmin.f32 %v1051, 20.0
        %v1068 = vmin.f32 %v1052, 20.0
        %v1069 = vmin.f32 %v1053, 20.0
        %v1070 = vmin.f32 %v1054, 20.0
        %v1071 = vmin.f32 %v1055, 20.0
        %v1072 = vmin.f32 %v1056, 20.0
        %v1073 = vmin.f32 %v1057, 20.0
        %v1074 = vmin.f32 %v1058, 20.0
        %v1075 = vmin.f32 %v1059, 20.0
        %v1076 = vmin.f32 %v1060, 20.0
        %v1077 = vmin.f32 %v1061, 20.0
        %vm1078 = vcmp.gt.f32.partialorder %v1046, 20.0
        %vm1079 = vcmp.gt.f32.partialorder %v1047, 20.0
        %vm1080 = vcmp.gt.f32.partialorder %v1048, 20.0
        %vm1081 = vcmp.gt.f32.partialorder %v1049, 20.0
        %vm1082 = vcmp.gt.f32.partialorder %v1050, 20.0
        %vm1083 = vcmp.gt.f32.partialorder %v1051, 20.0
        %vm1084 = vcmp.gt.f32.partialorder %v1052, 20.0
        %vm1085 = vcmp.gt.f32.partialorder %v1053, 20.0
        %vm1086 = vcmp.gt.f32.partialorder %v1054, 20.0
        %vm1087 = vcmp.gt.f32.partialorder %v1055, 20.0
        %vm1088 = vcmp.gt.f32.partialorder %v1056, 20.0
        %vm1089 = vcmp.gt.f32.partialorder %v1057, 20.0
        %vm1090 = vcmp.gt.f32.partialorder %v1058, 20.0
        %vm1091 = vcmp.gt.f32.partialorder %v1059, 20.0
        %vm1092 = vcmp.gt.f32.partialorder %v1060, 20.0
        %vm1093 = vcmp.gt.f32.partialorder %v1061, 20.0
        %v1094 = vmul.f32 %v1062, 1.442695
        %v1095 = vpow.pop %v1094
        %v1096 = vmul.f32 %v1063, 1.442695
        %v1097 = vpow.pop %v1096
        %v1098 = vmul.f32 %v1064, 1.442695
        %v1099 = vpow.pop %v1098
        %v1100 = vmul.f32 %v1065, 1.442695
        %v1101 = vpow.pop %v1100
        %v1102 = vmul.f32 %v1066, 1.442695
        %v1103 = vpow.pop %v1102
        %v1104 = vmul.f32 %v1067, 1.442695
        %v1105 = vpow.pop %v1104
        %v1106 = vmul.f32 %v1068, 1.442695
        %v1107 = vpow.pop %v1106
        %v1108 = vmul.f32 %v1069, 1.442695
        %v1109 = vpow.pop %v1108
        %v1110 = vmul.f32 %v1070, 1.442695
        %v1111 = vpow.pop %v1110
        %v1112 = vmul.f32 %v1071, 1.442695
        %v1113 = vpow.pop %v1112
        %v1114 = vmul.f32 %v1072, 1.442695
        %v1115 = vpow.pop %v1114
        %v1116 = vmul.f32 %v1073, 1.442695
        %v1117 = vpow.pop %v1116
        %v1118 = vmul.f32 %v1074, 1.442695
        %v1119 = vpow.pop %v1118
        %v1120 = vmul.f32 %v1075, 1.442695
        %v1121 = vpow.pop %v1120
        %v1122 = vmul.f32 %v1076, 1.442695
        %v1123 = vpow.pop %v1122
        %v1124 = vmul.f32 %v1077, 1.442695
        %v1125 = vpow.pop %v1124
        %v1126 = vadd.f32 %v1095, 1.0
        %v1127 = vlog2.pop %v1126
        %v1128 = vmul.f32 %v1127, 0.6931472
        %v1129 = vmul.f32 -0.5, %v1095
        %v1130 = vadd.f32 %v1129, 1.0
        %v1131 = vmul.f32 %v1130, %v1095
        %v1132 = vand.u32 2147483647, %v1095
        %vm1133 = vcmp.lt.f32.partialorder %v1132, 0.0004427343
        %v1134 = vsel %vm1133, %v1131, %v1128
        %v1135 = vadd.f32 %v1097, 1.0
        %v1136 = vlog2.pop %v1135
        %v1137 = vmul.f32 %v1136, 0.6931472
        %v1138 = vmul.f32 -0.5, %v1097
        %v1139 = vadd.f32 %v1138, 1.0
        %v1140 = vmul.f32 %v1139, %v1097
        %v1141 = vand.u32 2147483647, %v1097
        %vm1142 = vcmp.lt.f32.partialorder %v1141, 0.0004427343
        %v1143 = vsel %vm1142, %v1140, %v1137
        %v1144 = vadd.f32 %v1099, 1.0
        %v1145 = vlog2.pop %v1144
        %v1146 = vmul.f32 %v1145, 0.6931472
        %v1147 = vmul.f32 -0.5, %v1099
        %v1148 = vadd.f32 %v1147, 1.0
        %v1149 = vmul.f32 %v1148, %v1099
        %v1150 = vand.u32 2147483647, %v1099
        %vm1151 = vcmp.lt.f32.partialorder %v1150, 0.0004427343
        %v1152 = vsel %vm1151, %v1149, %v1146
        %v1153 = vadd.f32 %v1101, 1.0
        %v1154 = vlog2.pop %v1153
        %v1155 = vmul.f32 %v1154, 0.6931472
        %v1156 = vmul.f32 -0.5, %v1101
        %v1157 = vadd.f32 %v1156, 1.0
        %v1158 = vmul.f32 %v1157, %v1101
        %v1159 = vand.u32 2147483647, %v1101
        %vm1160 = vcmp.lt.f32.partialorder %v1159, 0.0004427343
        %v1161 = vsel %vm1160, %v1158, %v1155
        %v1162 = vadd.f32 %v1103, 1.0
        %v1163 = vlog2.pop %v1162
        %v1164 = vmul.f32 %v1163, 0.6931472
        %v1165 = vmul.f32 -0.5, %v1103
        %v1166 = vadd.f32 %v1165, 1.0
        %v1167 = vmul.f32 %v1166, %v1103
        %v1168 = vand.u32 2147483647, %v1103
        %vm1169 = vcmp.lt.f32.partialorder %v1168, 0.0004427343
        %v1170 = vsel %vm1169, %v1167, %v1164
        %v1171 = vadd.f32 %v1105, 1.0
        %v1172 = vlog2.pop %v1171
        %v1173 = vmul.f32 %v1172, 0.6931472
        %v1174 = vmul.f32 -0.5, %v1105
        %v1175 = vadd.f32 %v1174, 1.0
        %v1176 = vmul.f32 %v1175, %v1105
        %v1177 = vand.u32 2147483647, %v1105
        %vm1178 = vcmp.lt.f32.partialorder %v1177, 0.0004427343
        %v1179 = vsel %vm1178, %v1176, %v1173
        %v1180 = vadd.f32 %v1107, 1.0
        %v1181 = vlog2.pop %v1180
        %v1182 = vmul.f32 %v1181, 0.6931472
        %v1183 = vmul.f32 -0.5, %v1107
        %v1184 = vadd.f32 %v1183, 1.0
        %v1185 = vmul.f32 %v1184, %v1107
        %v1186 = vand.u32 2147483647, %v1107
        %vm1187 = vcmp.lt.f32.partialorder %v1186, 0.0004427343
        %v1188 = vsel %vm1187, %v1185, %v1182
        %v1189 = vadd.f32 %v1109, 1.0
        %v1190 = vlog2.pop %v1189
        %v1191 = vmul.f32 %v1190, 0.6931472
        %v1192 = vmul.f32 -0.5, %v1109
        %v1193 = vadd.f32 %v1192, 1.0
        %v1194 = vmul.f32 %v1193, %v1109
        %v1195 = vand.u32 2147483647, %v1109
        %vm1196 = vcmp.lt.f32.partialorder %v1195, 0.0004427343
        %v1197 = vsel %vm1196, %v1194, %v1191
        %v1198 = vadd.f32 %v1111, 1.0
        %v1199 = vlog2.pop %v1198
        %v1200 = vmul.f32 %v1199, 0.6931472
        %v1201 = vmul.f32 -0.5, %v1111
        %v1202 = vadd.f32 %v1201, 1.0
        %v1203 = vmul.f32 %v1202, %v1111
        %v1204 = vand.u32 2147483647, %v1111
        %vm1205 = vcmp.lt.f32.partialorder %v1204, 0.0004427343
        %v1206 = vsel %vm1205, %v1203, %v1200
        %v1207 = vadd.f32 %v1113, 1.0
        %v1208 = vlog2.pop %v1207
        %v1209 = vmul.f32 %v1208, 0.6931472
        %v1210 = vmul.f32 -0.5, %v1113
        %v1211 = vadd.f32 %v1210, 1.0
        %v1212 = vmul.f32 %v1211, %v1113
        %v1213 = vand.u32 2147483647, %v1113
        %vm1214 = vcmp.lt.f32.partialorder %v1213, 0.0004427343
        %v1215 = vsel %vm1214, %v1212, %v1209
        %v1216 = vadd.f32 %v1115, 1.0
        %v1217 = vlog2.pop %v1216
        %v1218 = vmul.f32 %v1217, 0.6931472
        %v1219 = vmul.f32 -0.5, %v1115
        %v1220 = vadd.f32 %v1219, 1.0
        %v1221 = vmul.f32 %v1220, %v1115
        %v1222 = vand.u32 2147483647, %v1115
        %vm1223 = vcmp.lt.f32.partialorder %v1222, 0.0004427343
        %v1224 = vsel %vm1223, %v1221, %v1218
        %v1225 = vadd.f32 %v1117, 1.0
        %v1226 = vlog2.pop %v1225
        %v1227 = vmul.f32 %v1226, 0.6931472
        %v1228 = vmul.f32 -0.5, %v1117
        %v1229 = vadd.f32 %v1228, 1.0
        %v1230 = vmul.f32 %v1229, %v1117
        %v1231 = vand.u32 2147483647, %v1117
        %vm1232 = vcmp.lt.f32.partialorder %v1231, 0.0004427343
        %v1233 = vsel %vm1232, %v1230, %v1227
        %v1234 = vadd.f32 %v1119, 1.0
        %v1235 = vlog2.pop %v1234
        %v1236 = vmul.f32 %v1235, 0.6931472
        %v1237 = vmul.f32 -0.5, %v1119
        %v1238 = vadd.f32 %v1237, 1.0
        %v1239 = vmul.f32 %v1238, %v1119
        %v1240 = vand.u32 2147483647, %v1119
        %vm1241 = vcmp.lt.f32.partialorder %v1240, 0.0004427343
        %v1242 = vsel %vm1241, %v1239, %v1236
        %v1243 = vadd.f32 %v1121, 1.0
        %v1244 = vlog2.pop %v1243
        %v1245 = vmul.f32 %v1244, 0.6931472
        %v1246 = vmul.f32 -0.5, %v1121
        %v1247 = vadd.f32 %v1246, 1.0
        %v1248 = vmul.f32 %v1247, %v1121
        %v1249 = vand.u32 2147483647, %v1121
        %vm1250 = vcmp.lt.f32.partialorder %v1249, 0.0004427343
        %v1251 = vsel %vm1250, %v1248, %v1245
        %v1252 = vadd.f32 %v1123, 1.0
        %v1253 = vlog2.pop %v1252
        %v1254 = vmul.f32 %v1253, 0.6931472
        %v1255 = vmul.f32 -0.5, %v1123
        %v1256 = vadd.f32 %v1255, 1.0
        %v1257 = vmul.f32 %v1256, %v1123
        %v1258 = vand.u32 2147483647, %v1123
        %vm1259 = vcmp.lt.f32.partialorder %v1258, 0.0004427343
        %v1260 = vsel %vm1259, %v1257, %v1254
        %v1261 = vadd.f32 %v1125, 1.0
        %v1262 = vlog2.pop %v1261
        %v1263 = vmul.f32 %v1262, 0.6931472
        %v1264 = vmul.f32 -0.5, %v1125
        %v1265 = vadd.f32 %v1264, 1.0
        %v1266 = vmul.f32 %v1265, %v1125
        %v1267 = vand.u32 2147483647, %v1125
        %vm1268 = vcmp.lt.f32.partialorder %v1267, 0.0004427343
        %v1269 = vsel %vm1268, %v1266, %v1263
        %v1270 = vmul.f32 %v1134, %v802
        %v1271 = vmul.f32 %v1143, %v802
        %v1272 = vmul.f32 %v1152, %v802
        %v1273 = vmul.f32 %v1161, %v802
        %v1274 = vmul.f32 %v1170, %v802
        %v1275 = vmul.f32 %v1179, %v802
        %v1276 = vmul.f32 %v1188, %v802
        %v1277 = vmul.f32 %v1197, %v802
        %v1278 = vmul.f32 %v1206, %v802
        %v1279 = vmul.f32 %v1215, %v802
        %v1280 = vmul.f32 %v1224, %v802
        %v1281 = vmul.f32 %v1233, %v802
        %v1282 = vmul.f32 %v1242, %v802
        %v1283 = vmul.f32 %v1251, %v802
        %v1284 = vmul.f32 %v1260, %v802
        %v1285 = vmul.f32 %v1269, %v802
        %v1286 = vsel %vm1078, %v935, %v1270
        %v1287 = vsel %vm1079, %v937, %v1271
        %v1288 = vsel %vm1080, %v1024, %v1272
        %v1289 = vsel %vm1081, %v1026, %v1273
        %v1290 = vsel %vm1082, %v941, %v1274
        %v1291 = vsel %vm1083, %v943, %v1275
        %v1292 = vsel %vm1084, %v1030, %v1276
        %v1293 = vsel %vm1085, %v1032, %v1277
        %v1294 = vsel %vm1086, %v947, %v1278
        %v1295 = vsel %vm1087, %v949, %v1279
        %v1296 = vsel %vm1088, %v1036, %v1280
        %v1297 = vsel %vm1089, %v1038, %v1281
        %v1298 = vsel %vm1090, %v953, %v1282
        %v1299 = vsel %vm1091, %v955, %v1283
        %v1300 = vsel %vm1092, %v1042, %v1284
        %v1301 = vsel %vm1093, %v1044, %v1285
        %1303 = vset.pattern.permute.xlu0 0
        %1304 = vperm.xlu0 %1303, %v297
        %v1305 = vpop.permute.xlu0 %1304
        %v1308 = vsel %vm855, %v288, 0
        %1310 = vmatprep.subr.mxu0 %v1287
        %1311 = vmatpush1.msra.mxu0 %v1286
        %1312 = vmatprep.subr.mxu0 %v1291
        %1313 = vmatpush1.msra.mxu0 %v1290
        %1314 = vmatprep.subr.mxu0 %v1295
        %1315 = vmatpush1.msra.mxu0 %v1294
        %1316 = vmatprep.subr.mxu0 %v1299
        %1317 = vmatpush1.msra.mxu0 %v1298
        %1318 = vmatprep.subr.mxu0 0.0
        %1319 = vmatpush1.msra.mxu0 0.0
        %1320 = vmatprep.subr.mxu0 0.0
        %1321 = vmatpush1.msra.mxu0 0.0
        %1322 = vmatprep.subr.mxu0 0.0
        %1323 = vmatpush1.msra.mxu0 0.0
        %1324 = vmatprep.subr.mxu0 0.0
        %1325 = vmatpush1.msra.mxu0 0.0
        %1326 = vmatprep.subr.mxu0 0.0
        %1327 = vmatpush1.msra.mxu0 0.0
        %1328 = vmatprep.subr.mxu0 0.0
        %1329 = vmatpush1.msra.mxu0 0.0
        %1330 = vmatprep.subr.mxu0 0.0
        %1331 = vmatpush1.msra.mxu0 0.0
        %1332 = vmatprep.subr.mxu0 0.0
        %1333 = vmatpush1.msra.mxu0 0.0
        %1334 = vmatprep.subr.mxu0 0.0
        %1335 = vmatpush1.msra.mxu0 0.0
        %1336 = vmatprep.subr.mxu0 0.0
        %1337 = vmatpush1.msra.mxu0 0.0
        %1338 = vmatprep.subr.mxu0 0.0
        %1339 = vmatpush1.msra.mxu0 0.0
        %1340 = vmatprep.subr.mxu0 0.0
        %1341 = vmatpush1.msra.mxu0 0.0
        %1342 = vmatprep.subr.mxu0 0.0
        %1343 = vmatpush1.msra.mxu0 0.0
        %1344 = vmatprep.subr.mxu0 0.0
        %1345 = vmatpush1.msra.mxu0 0.0
        %1346 = vmatprep.subr.mxu0 0.0
        %1347 = vmatpush1.msra.mxu0 0.0
        %1348 = vmatprep.subr.mxu0 0.0
        %1349 = vmatpush1.msra.mxu0 0.0
        %1350 = vmatprep.subr.mxu0 0.0
        %1351 = vmatpush1.msra.mxu0 0.0
        %1352 = vmatprep.subr.mxu0 0.0
        %1353 = vmatpush1.msra.mxu0 0.0
        %1354 = vmatprep.subr.mxu0 0.0
        %1355 = vmatpush1.msra.mxu0 0.0
        %1356 = vmatprep.subr.mxu0 0.0
        %1357 = vmatpush1.msra.mxu0 0.0
        %1358 = vmatprep.subr.mxu0 0.0
        %1359 = vmatpush1.msra.mxu0 0.0
        %1360 = vmatprep.subr.mxu0 0.0
        %1361 = vmatpush1.msra.mxu0 0.0
        %1362 = vmatprep.subr.mxu0 0.0
        %1363 = vmatpush1.msra.mxu0 0.0
        %1364 = vmatprep.subr.mxu0 0.0
        %1365 = vmatpush1.msra.mxu0 0.0
        %1366 = vmatprep.subr.mxu0 0.0
        %1367 = vmatpush1.msra.mxu0 0.0
        %1368 = vmatprep.subr.mxu0 0.0
        %1369 = vmatpush1.msra.mxu0 0.0
        %1370 = vmatprep.subr.mxu0 0.0
        %1371 = vmatpush1.msra.mxu0 0.0
        %1372 = vmatprep.subr.mxu0 0.0
        %1373 = vmatpush1.msra.mxu0 0.0
        %1374 = vmatprep.mubr.f32.mxu0 0.0
        %1375 = vmatmul.mubr.f32.gmra.mrb[0].mxu0 %v1308
        %v1376 = vpop.f32.mrb[0].mxu0
        %v1377 = vadd.f32 %v1305, %v1376
        %v1378 = vpop.f32.mrb[0].mxu0
        %v1379 = vadd.f32 %v1305, %v1378
        %1380 = vdwg.mxu0
        %1381 = vmatprep.subr.mxu0 %v1289
        %1382 = vmatpush1.msra.mxu0 %v1288
        %1383 = vmatprep.subr.mxu0 %v1293
        %1384 = vmatpush1.msra.mxu0 %v1292
        %1385 = vmatprep.subr.mxu0 %v1297
        %1386 = vmatpush1.msra.mxu0 %v1296
        %1387 = vmatprep.subr.mxu0 %v1301
        %1388 = vmatpush1.msra.mxu0 %v1300
        %1389 = vmatprep.subr.mxu0 0.0
        %1390 = vmatpush1.msra.mxu0 0.0
        %1391 = vmatprep.subr.mxu0 0.0
        %1392 = vmatpush1.msra.mxu0 0.0
        %1393 = vmatprep.subr.mxu0 0.0
        %1394 = vmatpush1.msra.mxu0 0.0
        %1395 = vmatprep.subr.mxu0 0.0
        %1396 = vmatpush1.msra.mxu0 0.0
        %1397 = vmatprep.subr.mxu0 0.0
        %1398 = vmatpush1.msra.mxu0 0.0
        %1399 = vmatprep.subr.mxu0 0.0
        %1400 = vmatpush1.msra.mxu0 0.0
        %1401 = vmatprep.subr.mxu0 0.0
        %1402 = vmatpush1.msra.mxu0 0.0
        %1403 = vmatprep.subr.mxu0 0.0
        %1404 = vmatpush1.msra.mxu0 0.0
        %1405 = vmatprep.subr.mxu0 0.0
        %1406 = vmatpush1.msra.mxu0 0.0
        %1407 = vmatprep.subr.mxu0 0.0
        %1408 = vmatpush1.msra.mxu0 0.0
        %1409 = vmatprep.subr.mxu0 0.0
        %1410 = vmatpush1.msra.mxu0 0.0
        %1411 = vmatprep.subr.mxu0 0.0
        %1412 = vmatpush1.msra.mxu0 0.0
        %1413 = vmatprep.subr.mxu0 0.0
        %1414 = vmatpush1.msra.mxu0 0.0
        %1415 = vmatprep.subr.mxu0 0.0
        %1416 = vmatpush1.msra.mxu0 0.0
        %1417 = vmatprep.subr.mxu0 0.0
        %1418 = vmatpush1.msra.mxu0 0.0
        %1419 = vmatprep.subr.mxu0 0.0
        %1420 = vmatpush1.msra.mxu0 0.0
        %1421 = vmatprep.subr.mxu0 0.0
        %1422 = vmatpush1.msra.mxu0 0.0
        %1423 = vmatprep.subr.mxu0 0.0
        %1424 = vmatpush1.msra.mxu0 0.0
        %1425 = vmatprep.subr.mxu0 0.0
        %1426 = vmatpush1.msra.mxu0 0.0
        %1427 = vmatprep.subr.mxu0 0.0
        %1428 = vmatpush1.msra.mxu0 0.0
        %1429 = vmatprep.subr.mxu0 0.0
        %1430 = vmatpush1.msra.mxu0 0.0
        %1431 = vmatprep.subr.mxu0 0.0
        %1432 = vmatpush1.msra.mxu0 0.0
        %1433 = vmatprep.subr.mxu0 0.0
        %1434 = vmatpush1.msra.mxu0 0.0
        %1435 = vmatprep.subr.mxu0 0.0
        %1436 = vmatpush1.msra.mxu0 0.0
        %1437 = vmatprep.subr.mxu0 0.0
        %1438 = vmatpush1.msra.mxu0 0.0
        %1439 = vmatprep.subr.mxu0 0.0
        %1440 = vmatpush1.msra.mxu0 0.0
        %1441 = vmatprep.subr.mxu0 0.0
        %1442 = vmatpush1.msra.mxu0 0.0
        %1443 = vmatprep.subr.mxu0 0.0
        %1444 = vmatpush1.msra.mxu0 0.0
        %1445 = vmatprep.mubr.f32.mxu0 0.0
        %1446 = vmatmul.mubr.f32.gmra.mrb[0].mxu0 %v1308
        %v1447 = vpop.f32.mrb[0].mxu0
        %v1448 = vadd.f32 %v1305, %v1447
        %v1449 = vpop.f32.mrb[0].mxu0
        %v1450 = vadd.f32 %v1305, %v1449
        %1451 = vdwg.mxu0
        %v1456 = vrot.slane %v1377, 1
        %v1457 = vrot.slane %v1379, 1
        %v1458 = vrot.slane %v1448, 1
        %v1459 = vrot.slane %v1450, 1
        %v1464 = vmin.f32 %v1377, %v1456
        %v1465 = vmin.f32 %v1379, %v1457
        %v1466 = vmin.f32 %v1448, %v1458
        %v1467 = vmin.f32 %v1450, %v1459
        %v1472 = vrot.slane %v1464, 1
        %v1473 = vrot.slane %v1465, 1
        %v1474 = vrot.slane %v1466, 1
        %v1475 = vrot.slane %v1467, 1
        %v1480 = vmax.f32 %v1377, %v1472
        %v1481 = vmax.f32 %v1379, %v1473
        %v1482 = vmax.f32 %v1448, %v1474
        %v1483 = vmax.f32 %v1450, %v1475
        %v1488 = vcombine.low %v1480, %v1481
        %v1489 = vcombine.low %v1482, %v1483
        %v1491 = vunpack.c.l.s4 1966171168
        %v1492 = vunpack.c.0.s8 %v1491
        %v1493 = vlaneseq
        %v1494 = vshrl.u32 %v1493, 7
        %v1495 = vsub.s32 %v1492, %v1494
        %v1496 = vrot.slane %v1488, %v1495
        %v1498 = vunpack.c.l.s4 1966171168
        %v1499 = vunpack.c.0.s8 %v1498
        %v1500 = vlaneseq
        %v1501 = vshrl.u32 %v1500, 7
        %v1502 = vsub.s32 %v1499, %v1501
        %v1503 = vrot.slane %v1489, %v1502
        %v1504 = vcombine.low %v1496, %v1503
        %v1506 = vunpack.c.l.s4 1966171168
        %v1507 = vunpack.c.0.s8 %v1506
        %v1508 = vlaneseq
        %v1509 = vshrl.u32 %v1508, 7
        %v1510 = vsub.s32 %v1507, %v1509
        %v1511 = vrot.slane %v1504, %v1510
        %v1513 = vlaneseq
        %vm1514 = vcmp.ge.s32.totalorder %v1513, 0
        %vm1515 = vcmp.lt.s32.totalorder %v1513, 512
        %vm1516 = vmand %vm1514, %vm1515
        %1517 = vst.msk [vmem:[%s272] ss:$4 sm:$0xf] %vm1516, %v1511
        %v1518 = vcombine.low %v1377, %v1379
        %v1519 = vcombine.low %v1448, %v1450
        %v1520 = vrot.slane %v1518, 7
        %v1521 = vrot.slane %v1519, 7
        %1524 = vst [vmem:[%s272] sm:$0xee] %v1520
        %1525 = vst [vmem:[%s272 + $0x8] sm:$0xee] %v1521
        %s1526 = sand.u32 %s181, 1
        %s1527 = scalar_lea.sflag [#allocation3], %s1526
        %s1528 = sand.u32 %s181, 1
        %s1529 = smul.addr %s1528, 16
        %s1530 = scalar_lea.vmem [#allocation2], %s1529
        // Predicated region
        $region49: #{tpu_custom_call.1} parent=47 // pred_check
          %p1531 = pneg %p191
        $region50: #{tpu_custom_call.1} parent=47 // pred_check_branch
          %1533 = sbr.rel (%p1531) target = $region52
        $region51: #{tpu_custom_call.1} parent=47 // pred_region
          %s1534 = smul.u32 4, %s21
          %s1536 = ssub.s32 256, 256
          %1537 = vsyncadd %s1527, %s1536
          %s1538 = smul.addr %s1534, 64
          %s1539 = scalar_lea.hbm %s7, %s1538
          %s1541 = sshll.u32 %s1530, 4
          %s1542 = int_to_ptr.vmem [resolvable:$true] %s1541
          %1544 = dma.vmem_to_hbm [thread:$0]  %s1542, 256, %s1539, %s1527
        $region52: #{tpu_custom_call.1} parent=47 // pred_fallthru
          _
      $region48: #{tpu_custom_call.1} parent=5 // pred_fallthru
        _
      %p1545 = scmp.le.s32.totalorder 2, %s16
      // Predicated region
      $region53: #{tpu_custom_call.1} parent=5 // pred_check
        %p1546 = pneg %p1545
      $region54: #{tpu_custom_call.1} parent=5 // pred_check_branch
        %1548 = sbr.rel (%p1546) target = $region56
      $region55: #{tpu_custom_call.1} parent=5 // pred_region
        %s1549 = ssub.s32 %s16, 2
        // Predicated region
        $region57: #{tpu_custom_call.1} parent=55 // pred_check
          %p1550 = pneg %p197
        $region58: #{tpu_custom_call.1} parent=55 // pred_check_branch
          %1552 = sbr.rel (%p1550) target = $region60
        $region59: #{tpu_custom_call.1} parent=55 // pred_region
          %s1553 = sand.u32 %s182, 1
          %s1554 = scalar_lea.sflag [#allocation3], %s1553
          %s1555 = sand.u32 %s182, 1
          %s1556 = smul.addr %s1555, 16
          %s1557 = scalar_lea.vmem [#allocation2], %s1556
          %1558 = dma.done %s1554, 256
        $region60: #{tpu_custom_call.1} parent=55 // pred_fallthru
          _
      $region56: #{tpu_custom_call.1} parent=5 // pred_fallthru
        _
    $region6: #{tpu_custom_call.1} parent=1 // loop_footer
      %s20 = sadd.s32 1, %s16
    $region7: #{tpu_custom_call.1} parent=1 // loop_footer_branch
      %15 = sbr.rel target = $region3
    $region8: #{tpu_custom_call.1} parent=1 // loop_exit
      _
    %1559 = vsyncpa [#allocation3], 1
    %s1560 = scalar_lea.sflag [#allocation3], 1
    %1561 = vsyncpa %s1560, 1

</llo_original>
